<compile_context>
chip_gen: v5e
topology: v5e:2x2
jax: 0.10.0
libtpu: 0.0.40
codegen_flags: <defaults>
</compile_context>

<pallas_src>
from functools import partial

import jax
import jax.numpy as jnp
from jax.experimental import pallas as pl
from jax.experimental.pallas import tpu as pltpu  # noqa: F401  (TPU backend)


# ----------------------------------------------------------------------------
# Fused kernel: 2 x TransformerEncoderLayer (post-norm, ReLU) + CLS Linear
#   per layer:  x = norm1(x + self_attn(x)) ; x = norm2(x + FFN(x))
#   dropout is identity (inference / frozen module).
# ----------------------------------------------------------------------------
def bert_cls_fused_kernel(x_ref, mask_ref,
                          wqkv_ref, bqkv_ref, wo_ref, bo_ref,
                          g1_ref, beta1_ref, w1_ref, bf1_ref,
                          w2_ref, bf2_ref, g2_ref, beta2_ref,
                          wout_ref, bout_ref,
                          out_ref, *, num_heads, num_layers, batch, seq):
    B, S, H, L = batch, seq, num_heads, num_layers
    x = x_ref[...].astype(jnp.float32)            # (B, S, D)
    D = x.shape[-1]
    hd = D // H
    scale = 1.0 / (hd ** 0.5)
    mask_bias = mask_ref[...]                     # (B, 1, S): 0 or -1e9 per key

    xf = x.reshape(B * S, D)                      # fold batch into sublane axis

    for l in range(L):                            # static unroll: 2 layers
        wqkv = wqkv_ref[l]                        # (D, 3D)  bf16
        wo = wo_ref[l]                            # (D, D)   bf16
        w1 = w1_ref[l]                            # (D, Fd)  bf16
        w2 = w2_ref[l]                            # (Fd, D)  bf16
        bqkv = bqkv_ref[l]                        # (1, 3D)  f32
        bo = bo_ref[l]                            # (1, D)   f32
        g1, be1 = g1_ref[l], beta1_ref[l]
        bf1 = bf1_ref[l]
        bf2 = bf2_ref[l]
        g2, be2 = g2_ref[l], beta2_ref[l]

        # ---- multi-head self-attention ---------------------------------
        qkv = jnp.dot(xf.astype(jnp.bfloat16), wqkv,
                      preferred_element_type=jnp.float32) + bqkv     # (BS, 3D)
        q = (qkv[:, :D] * scale).reshape(B, S, D)
        k = qkv[:, D:2 * D].reshape(B, S, D)
        v = qkv[:, 2 * D:].reshape(B, S, D)

        attn = jnp.zeros((B * S, D), jnp.float32)
        for h in range(H):                        # tiny static unroll over heads
            sl = slice(h * hd, (h + 1) * hd)
            qh = q[:, :, sl].astype(jnp.bfloat16)          # (B, S, hd)
            kh = k[:, :, sl].astype(jnp.bfloat16)
            vh = v[:, :, sl].astype(jnp.bfloat16)
            s = jnp.einsum('bqd,bkd->bqk', qh, kh,
                           preferred_element_type=jnp.float32) + mask_bias
            s = s - jnp.max(s, axis=-1, keepdims=True)
            p = jnp.exp(s)
            p = p * pl.reciprocal(jnp.sum(p, axis=-1, keepdims=True), approx=True)
            oh = jnp.einsum('bqk,bkd->bqd', p.astype(jnp.bfloat16), vh,
                            preferred_element_type=jnp.float32)      # (B, S, hd)
            # project this head through its Wo row block and accumulate
            # (replaces the concat of lane-width-hd pieces)
            attn = attn + jnp.dot(oh.reshape(B * S, hd).astype(jnp.bfloat16),
                                  wo[sl, :],
                                  preferred_element_type=jnp.float32)
        attn = attn + bo

        # ---- residual + LayerNorm 1 (f32 elementwise) --------------------
        xf = xf + attn
        mu = jnp.mean(xf, axis=-1, keepdims=True)
        var = jnp.mean((xf - mu) ** 2, axis=-1, keepdims=True)
        xf = (xf - mu) * jax.lax.rsqrt(var + 1e-5) * g1 + be1

        # ---- feed-forward (ReLU) ------------------------------------------
        # TODO(synk): at real BERT sizes (D=768, Fd=3072) tile the Fd axis with
        # an 'arbitrary' reduction grid dim + VMEM accumulator and Buffered(1)
        # weight specs to stay under v7x's 64 MiB VMEM.
        h1 = jnp.dot(xf.astype(jnp.bfloat16), w1,
                     preferred_element_type=jnp.float32) + bf1
        h1 = jnp.maximum(h1, 0.0)
        ff = jnp.dot(h1.astype(jnp.bfloat16), w2,
                     preferred_element_type=jnp.float32) + bf2

        # ---- residual + LayerNorm 2 (f32 elementwise) --------------------
        xf = xf + ff
        mu = jnp.mean(xf, axis=-1, keepdims=True)
        var = jnp.mean((xf - mu) ** 2, axis=-1, keepdims=True)
        xf = (xf - mu) * jax.lax.rsqrt(var + 1e-5) * g2 + be2

    # ---- CLS token (position 0 of each sequence) + output Linear ----------
    cls = xf.reshape(B, S, D)[:, 0, :]            # (B, D)
    pooled = jnp.dot(cls.astype(jnp.bfloat16), wout_ref[...],
                     preferred_element_type=jnp.float32) + bout_ref[...]
    out_ref[...] = pooled.astype(out_ref.dtype)   # (B, 128): lane-dense store


def bert_cls_fused(embs, mask_bias, p, *, num_heads):
    B, S, D = embs.shape
    L = p["wqkv"].shape[0]
    Fd = p["w1"].shape[2]
    O_pad = p["w_out"].shape[1]
    bs = B * S

    flops_layer = (2 * bs * D * 3 * D        # QKV projection
                   + 2 * B * S * S * D       # scores (all heads)
                   + 2 * B * S * S * D       # p @ v  (all heads)
                   + 2 * bs * D * D          # output projection
                   + 2 * bs * D * Fd         # FFN up
                   + 2 * bs * Fd * D)        # FFN down
    flops = L * flops_layer + 2 * B * D * O_pad
    transcendentals = L * (B * num_heads * S * S      # exp
                           + B * num_heads * S        # softmax reciprocal
                           + 2 * bs)                  # LayerNorm rsqrt
    args = (embs, mask_bias,
            p["wqkv"], p["bqkv"], p["wo"], p["bo"],
            p["g1"], p["beta1"], p["w1"], p["bf1"],
            p["w2"], p["bf2"], p["g2"], p["beta2"],
            p["w_out"], p["b_out"])
    bytes_accessed = (sum(int(a.size) * a.dtype.itemsize for a in args)
                      + B * O_pad * 4)

    kernel = partial(bert_cls_fused_kernel, num_heads=num_heads,
                     num_layers=L, batch=B, seq=S)
    return pl.pallas_call(
        kernel,
        out_shape=jax.ShapeDtypeStruct((B, O_pad), jnp.float32),
        cost_estimate=pl.CostEstimate(flops=flops,
                                      transcendentals=transcendentals,
                                      bytes_accessed=bytes_accessed),
    )(*args)


# ----------------------------------------------------------------------------
# Bert_CLS forward (thin JAX glue around the single fused Pallas kernel)
# ----------------------------------------------------------------------------
def bert_cls_forward(inputs, params, *, pad_idx, num_heads):
    B, S = inputs.shape
    src_nopad_mask = inputs != pad_idx                      # (B, S) bool
    # additive key-padding bias: -1e9 where pad, 0 elsewhere
    mask_bias = jnp.where(src_nopad_mask, 0.0, -1e9).astype(jnp.float32)
    mask_bias = mask_bias.reshape(B, 1, S)

    # TODO(synk): the frozen pretrained ERNIE model is replaced by a
    # deterministic token-embedding table producing hidden_states[-1].
    embs = params["emb_table"][inputs]                      # (B, S, D) f32

    pooled_pad = bert_cls_fused(embs, mask_bias, params, num_heads=num_heads)
    pooled_memory = pooled_pad[:, :params["output_dim"]]    # strip lane padding
    return {"pooled_memory": pooled_memory, "nopad_mask": src_nopad_mask}


# ----------------------------------------------------------------------------
# Deterministic parameter construction (layer weights stacked along axis 0)
# ----------------------------------------------------------------------------
def make_params(key, *, vocab, emb_size, num_heads, forward_expansion,
                output_dim, num_layers=2):
    D = emb_size
    Fd = forward_expansion * D
    O_pad = max(128, ((output_dim + 127) // 128) * 128)
    ks = iter(jax.random.split(key, 16))
    nrm = lambda shape, s=0.02: (s * jax.random.normal(next(ks), shape)
                                 ).astype(jnp.float32)

    # matmul operands stored bf16 (MXU-native, half the HBM->VMEM bytes);
    # biases / LayerNorm params stay f32.
    wqkv = nrm((num_layers, D, 3 * D)).astype(jnp.bfloat16)
    bqkv = nrm((num_layers, 1, 3 * D))
    wo = nrm((num_layers, D, D)).astype(jnp.bfloat16)
    bo = nrm((num_layers, 1, D))
    w1 = nrm((num_layers, D, Fd)).astype(jnp.bfloat16)
    bf1 = nrm((num_layers, 1, Fd))
    w2 = nrm((num_layers, Fd, D)).astype(jnp.bfloat16)
    bf2 = nrm((num_layers, 1, D))
    g1 = jnp.ones((num_layers, 1, D), jnp.float32)
    beta1 = jnp.zeros((num_layers, 1, D), jnp.float32)
    g2 = jnp.ones((num_layers, 1, D), jnp.float32)
    beta2 = jnp.zeros((num_layers, 1, D), jnp.float32)

    w_out = nrm((D, output_dim))
    b_out = nrm((output_dim,))
    # pad the output linear to 128 lanes -> unmasked (lane-dense) store in-kernel
    w_out_p = jnp.zeros((D, O_pad), jnp.float32).at[:, :output_dim].set(w_out)
    b_out_p = jnp.zeros((1, O_pad), jnp.float32).at[0, :output_dim].set(b_out)

    return {
        "emb_table": nrm((vocab, D), s=1.0),
        "wqkv": wqkv, "bqkv": bqkv, "wo": wo, "bo": bo,
        "g1": g1, "beta1": beta1, "w1": w1, "bf1": bf1,
        "w2": w2, "bf2": bf2, "g2": g2, "beta2": beta2,
        "w_out": w_out_p.astype(jnp.bfloat16), "b_out": b_out_p,
        "output_dim": output_dim,
    }


if __name__ == "__main__":
    # small config consistent with the module's __init__
    B, S = 2, 8
    EMB_SIZE = 32
    NUM_HEADS = 4
    FWD_EXPANSION = 4
    OUTPUT_DIM = 16
    VOCAB = 100
    PAD_IDX = 0

    key = jax.random.PRNGKey(0)
    k_tok, k_par = jax.random.split(key)

    params = make_params(k_par, vocab=VOCAB, emb_size=EMB_SIZE,
                         num_heads=NUM_HEADS, forward_expansion=FWD_EXPANSION,
                         output_dim=OUTPUT_DIM)

    # deterministic token ids with some padding at the end of batch item 1
    inputs = jax.random.randint(k_tok, (B, S), 1, VOCAB).astype(jnp.int32)
    inputs = inputs.at[1, -2:].set(PAD_IDX)

    out = bert_cls_forward(inputs, params, pad_idx=PAD_IDX, num_heads=NUM_HEADS)
    pooled = jax.block_until_ready(out["pooled_memory"])
    nopad = jax.block_until_ready(out["nopad_mask"])

    assert pooled.shape == (B, OUTPUT_DIM)
    assert nopad.shape == (B, S)
    assert bool(jnp.all(jnp.isfinite(pooled)))
    print("KERNEL_OK")
</pallas_src>

<mosaic_0001>
module attributes {stable_mosaic.version = 11 : i64} {
  func.func @bert_cls_fused_kernel(%arg0: memref<2x8x32xf32, #tpu.memory_space<vmem>>, %arg1: memref<2x1x8xf32, #tpu.memory_space<vmem>>, %arg2: memref<2x32x96xbf16, #tpu.memory_space<vmem>>, %arg3: memref<2x1x96xf32, #tpu.memory_space<vmem>>, %arg4: memref<2x32x32xbf16, #tpu.memory_space<vmem>>, %arg5: memref<2x1x32xf32, #tpu.memory_space<vmem>>, %arg6: memref<2x1x32xf32, #tpu.memory_space<vmem>>, %arg7: memref<2x1x32xf32, #tpu.memory_space<vmem>>, %arg8: memref<2x32x128xbf16, #tpu.memory_space<vmem>>, %arg9: memref<2x1x128xf32, #tpu.memory_space<vmem>>, %arg10: memref<2x128x32xbf16, #tpu.memory_space<vmem>>, %arg11: memref<2x1x32xf32, #tpu.memory_space<vmem>>, %arg12: memref<2x1x32xf32, #tpu.memory_space<vmem>>, %arg13: memref<2x1x32xf32, #tpu.memory_space<vmem>>, %arg14: memref<32x128xbf16, #tpu.memory_space<vmem>>, %arg15: memref<1x128xf32, #tpu.memory_space<vmem>>, %arg16: memref<2x128xf32, #tpu.memory_space<vmem>>) attributes {dimension_semantics = [], scalar_prefetch = 0 : i64, scratch_operands = 0 : i64, tpu.core_type = #tpu.core_type<tc>} {
    %c0 = arith.constant 0 : index
    %c0_0 = arith.constant 0 : index
    %c0_1 = arith.constant 0 : index
    %0 = vector.load %arg0[%c0, %c0_0, %c0_1] : memref<2x8x32xf32, #tpu.memory_space<vmem>>, vector<2x8x32xf32>
    %c0_2 = arith.constant 0 : index
    %c0_3 = arith.constant 0 : index
    %c0_4 = arith.constant 0 : index
    %1 = vector.load %arg1[%c0_2, %c0_3, %c0_4] : memref<2x1x8xf32, #tpu.memory_space<vmem>>, vector<2x1x8xf32>
    %2 = vector.shape_cast %0 : vector<2x8x32xf32> to vector<16x32xf32>
    %c0_5 = arith.constant 0 : index
    %c0_6 = arith.constant 0 : index
    %c0_7 = arith.constant 0 : index
    %3 = vector.load %arg2[%c0_5, %c0_6, %c0_7] : memref<2x32x96xbf16, #tpu.memory_space<vmem>>, vector<1x32x96xbf16>
    %4 = vector.shape_cast %3 : vector<1x32x96xbf16> to vector<32x96xbf16>
    %c0_8 = arith.constant 0 : index
    %c0_9 = arith.constant 0 : index
    %c0_10 = arith.constant 0 : index
    %5 = vector.load %arg4[%c0_8, %c0_9, %c0_10] : memref<2x32x32xbf16, #tpu.memory_space<vmem>>, vector<1x32x32xbf16>
    %6 = vector.shape_cast %5 : vector<1x32x32xbf16> to vector<32x32xbf16>
    %c0_11 = arith.constant 0 : index
    %c0_12 = arith.constant 0 : index
    %c0_13 = arith.constant 0 : index
    %7 = vector.load %arg8[%c0_11, %c0_12, %c0_13] : memref<2x32x128xbf16, #tpu.memory_space<vmem>>, vector<1x32x128xbf16>
    %8 = vector.shape_cast %7 : vector<1x32x128xbf16> to vector<32x128xbf16>
    %c0_14 = arith.constant 0 : index
    %c0_15 = arith.constant 0 : index
    %c0_16 = arith.constant 0 : index
    %9 = vector.load %arg10[%c0_14, %c0_15, %c0_16] : memref<2x128x32xbf16, #tpu.memory_space<vmem>>, vector<1x128x32xbf16>
    %10 = vector.shape_cast %9 : vector<1x128x32xbf16> to vector<128x32xbf16>
    %c0_17 = arith.constant 0 : index
    %c0_18 = arith.constant 0 : index
    %c0_19 = arith.constant 0 : index
    %11 = vector.load %arg3[%c0_17, %c0_18, %c0_19] : memref<2x1x96xf32, #tpu.memory_space<vmem>>, vector<1x1x96xf32>
    %12 = vector.shape_cast %11 : vector<1x1x96xf32> to vector<1x96xf32>
    %c0_20 = arith.constant 0 : index
    %c0_21 = arith.constant 0 : index
    %c0_22 = arith.constant 0 : index
    %13 = vector.load %arg5[%c0_20, %c0_21, %c0_22] : memref<2x1x32xf32, #tpu.memory_space<vmem>>, vector<1x1x32xf32>
    %14 = vector.shape_cast %13 : vector<1x1x32xf32> to vector<1x32xf32>
    %c0_23 = arith.constant 0 : index
    %c0_24 = arith.constant 0 : index
    %c0_25 = arith.constant 0 : index
    %15 = vector.load %arg6[%c0_23, %c0_24, %c0_25] : memref<2x1x32xf32, #tpu.memory_space<vmem>>, vector<1x1x32xf32>
    %16 = vector.shape_cast %15 : vector<1x1x32xf32> to vector<1x32xf32>
    %c0_26 = arith.constant 0 : index
    %c0_27 = arith.constant 0 : index
    %c0_28 = arith.constant 0 : index
    %17 = vector.load %arg7[%c0_26, %c0_27, %c0_28] : memref<2x1x32xf32, #tpu.memory_space<vmem>>, vector<1x1x32xf32>
    %18 = vector.shape_cast %17 : vector<1x1x32xf32> to vector<1x32xf32>
    %c0_29 = arith.constant 0 : index
    %c0_30 = arith.constant 0 : index
    %c0_31 = arith.constant 0 : index
    %19 = vector.load %arg9[%c0_29, %c0_30, %c0_31] : memref<2x1x128xf32, #tpu.memory_space<vmem>>, vector<1x1x128xf32>
    %20 = vector.shape_cast %19 : vector<1x1x128xf32> to vector<1x128xf32>
    %c0_32 = arith.constant 0 : index
    %c0_33 = arith.constant 0 : index
    %c0_34 = arith.constant 0 : index
    %21 = vector.load %arg11[%c0_32, %c0_33, %c0_34] : memref<2x1x32xf32, #tpu.memory_space<vmem>>, vector<1x1x32xf32>
    %22 = vector.shape_cast %21 : vector<1x1x32xf32> to vector<1x32xf32>
    %c0_35 = arith.constant 0 : index
    %c0_36 = arith.constant 0 : index
    %c0_37 = arith.constant 0 : index
    %23 = vector.load %arg12[%c0_35, %c0_36, %c0_37] : memref<2x1x32xf32, #tpu.memory_space<vmem>>, vector<1x1x32xf32>
    %24 = vector.shape_cast %23 : vector<1x1x32xf32> to vector<1x32xf32>
    %c0_38 = arith.constant 0 : index
    %c0_39 = arith.constant 0 : index
    %c0_40 = arith.constant 0 : index
    %25 = vector.load %arg13[%c0_38, %c0_39, %c0_40] : memref<2x1x32xf32, #tpu.memory_space<vmem>>, vector<1x1x32xf32>
    %26 = vector.shape_cast %25 : vector<1x1x32xf32> to vector<1x32xf32>
    %27 = arith.truncf %2 : vector<16x32xf32> to vector<16x32xbf16>
    %cst = arith.constant dense<0.000000e+00> : vector<16x96xf32>
    %28 = tpu.matmul %27, %4, %cst {dimension_numbers = #tpu.dot_dimension_numbers<[1], [0], [0], [1], [0, 0, 1, 1], [], []>} : vector<16x32xbf16>, vector<32x96xbf16>, vector<16x96xf32> -> vector<16x96xf32>
    %29 = vector.broadcast %12 : vector<1x96xf32> to vector<16x96xf32>
    %30 = arith.addf %28, %29 : vector<16x96xf32>
    %31 = vector.extract_strided_slice %30 {offsets = [0, 0], sizes = [16, 32], strides = [1, 1]} : vector<16x96xf32> to vector<16x32xf32>
    %cst_41 = arith.constant 0.353553385 : f32
    %32 = vector.broadcast %cst_41 : f32 to vector<16x32xf32>
    %33 = arith.mulf %31, %32 : vector<16x32xf32>
    %34 = vector.shape_cast %33 : vector<16x32xf32> to vector<2x8x32xf32>
    %35 = vector.extract_strided_slice %30 {offsets = [0, 32], sizes = [16, 32], strides = [1, 1]} : vector<16x96xf32> to vector<16x32xf32>
    %36 = vector.shape_cast %35 : vector<16x32xf32> to vector<2x8x32xf32>
    %37 = vector.extract_strided_slice %30 {offsets = [0, 64], sizes = [16, 32], strides = [1, 1]} : vector<16x96xf32> to vector<16x32xf32>
    %38 = vector.shape_cast %37 : vector<16x32xf32> to vector<2x8x32xf32>
    %cst_42 = arith.constant 0.000000e+00 : f32
    %39 = vector.broadcast %cst_42 : f32 to vector<16x32xf32>
    %40 = vector.extract_strided_slice %34 {offsets = [0, 0, 0], sizes = [2, 8, 8], strides = [1, 1, 1]} : vector<2x8x32xf32> to vector<2x8x8xf32>
    %41 = arith.truncf %40 : vector<2x8x8xf32> to vector<2x8x8xbf16>
    %42 = vector.extract_strided_slice %36 {offsets = [0, 0, 0], sizes = [2, 8, 8], strides = [1, 1, 1]} : vector<2x8x32xf32> to vector<2x8x8xf32>
    %43 = arith.truncf %42 : vector<2x8x8xf32> to vector<2x8x8xbf16>
    %44 = vector.extract_strided_slice %38 {offsets = [0, 0, 0], sizes = [2, 8, 8], strides = [1, 1, 1]} : vector<2x8x32xf32> to vector<2x8x8xf32>
    %45 = arith.truncf %44 : vector<2x8x8xf32> to vector<2x8x8xbf16>
    "tpu.trace_start"() <{level = 10 : i32, message = "bqd,bkd->bqk"}> : () -> ()
    %cst_43 = arith.constant dense<0.000000e+00> : vector<2x8x8xf32>
    %46 = tpu.matmul %41, %43, %cst_43 {dimension_numbers = #tpu.dot_dimension_numbers<[2], [2], [1], [1], [0, 0, 0, 1, 1, 1], [0], [0]>} : vector<2x8x8xbf16>, vector<2x8x8xbf16>, vector<2x8x8xf32> -> vector<2x8x8xf32>
    "tpu.trace_stop"() : () -> ()
    %47 = vector.broadcast %1 : vector<2x1x8xf32> to vector<2x8x8xf32>
    %48 = arith.addf %46, %47 : vector<2x8x8xf32>
    %cst_44 = arith.constant dense<0xFF800000> : vector<2x8xf32>
    %49 = vector.multi_reduction <maximumf>, %48, %cst_44 [2] : vector<2x8x8xf32> to vector<2x8xf32>
    %50 = vector.shape_cast %49 : vector<2x8xf32> to vector<2x8x1xf32>
    %51 = vector.broadcast %50 : vector<2x8x1xf32> to vector<2x8x8xf32>
    %52 = arith.subf %48, %51 : vector<2x8x8xf32>
    %53 = math.exp %52 : vector<2x8x8xf32>
    %cst_45 = arith.constant dense<0.000000e+00> : vector<2x8xf32>
    %54 = vector.multi_reduction <add>, %53, %cst_45 [2] : vector<2x8x8xf32> to vector<2x8xf32>
    %55 = vector.shape_cast %54 : vector<2x8xf32> to vector<2x8x1xf32>
    %56 = tpu.reciprocal %55 {approx = true} : vector<2x8x1xf32> -> vector<2x8x1xf32>
    %57 = vector.broadcast %56 : vector<2x8x1xf32> to vector<2x8x8xf32>
    %58 = arith.mulf %53, %57 : vector<2x8x8xf32>
    %59 = arith.truncf %58 : vector<2x8x8xf32> to vector<2x8x8xbf16>
    "tpu.trace_start"() <{level = 10 : i32, message = "bqk,bkd->bqd"}> : () -> ()
    %cst_46 = arith.constant dense<0.000000e+00> : vector<2x8x8xf32>
    %60 = tpu.matmul %59, %45, %cst_46 {dimension_numbers = #tpu.dot_dimension_numbers<[2], [1], [1], [2], [0, 0, 0, 1, 1, 2], [0], [0]>} : vector<2x8x8xbf16>, vector<2x8x8xbf16>, vector<2x8x8xf32> -> vector<2x8x8xf32>
    "tpu.trace_stop"() : () -> ()
    %61 = vector.shape_cast %60 : vector<2x8x8xf32> to vector<16x8xf32>
    %62 = arith.truncf %61 : vector<16x8xf32> to vector<16x8xbf16>
    %63 = vector.extract_strided_slice %6 {offsets = [0, 0], sizes = [8, 32], strides = [1, 1]} : vector<32x32xbf16> to vector<8x32xbf16>
    %cst_47 = arith.constant dense<0.000000e+00> : vector<16x32xf32>
    %64 = tpu.matmul %62, %63, %cst_47 {dimension_numbers = #tpu.dot_dimension_numbers<[1], [0], [0], [1], [0, 0, 1, 1], [], []>} : vector<16x8xbf16>, vector<8x32xbf16>, vector<16x32xf32> -> vector<16x32xf32>
    %65 = arith.addf %39, %64 : vector<16x32xf32>
    %66 = vector.extract_strided_slice %34 {offsets = [0, 0, 8], sizes = [2, 8, 8], strides = [1, 1, 1]} : vector<2x8x32xf32> to vector<2x8x8xf32>
    %67 = arith.truncf %66 : vector<2x8x8xf32> to vector<2x8x8xbf16>
    %68 = vector.extract_strided_slice %36 {offsets = [0, 0, 8], sizes = [2, 8, 8], strides = [1, 1, 1]} : vector<2x8x32xf32> to vector<2x8x8xf32>
    %69 = arith.truncf %68 : vector<2x8x8xf32> to vector<2x8x8xbf16>
    %70 = vector.extract_strided_slice %38 {offsets = [0, 0, 8], sizes = [2, 8, 8], strides = [1, 1, 1]} : vector<2x8x32xf32> to vector<2x8x8xf32>
    %71 = arith.truncf %70 : vector<2x8x8xf32> to vector<2x8x8xbf16>
    "tpu.trace_start"() <{level = 10 : i32, message = "bqd,bkd->bqk"}> : () -> ()
    %cst_48 = arith.constant dense<0.000000e+00> : vector<2x8x8xf32>
    %72 = tpu.matmul %67, %69, %cst_48 {dimension_numbers = #tpu.dot_dimension_numbers<[2], [2], [1], [1], [0, 0, 0, 1, 1, 1], [0], [0]>} : vector<2x8x8xbf16>, vector<2x8x8xbf16>, vector<2x8x8xf32> -> vector<2x8x8xf32>
    "tpu.trace_stop"() : () -> ()
    %73 = vector.broadcast %1 : vector<2x1x8xf32> to vector<2x8x8xf32>
    %74 = arith.addf %72, %73 : vector<2x8x8xf32>
    %cst_49 = arith.constant dense<0xFF800000> : vector<2x8xf32>
    %75 = vector.multi_reduction <maximumf>, %74, %cst_49 [2] : vector<2x8x8xf32> to vector<2x8xf32>
    %76 = vector.shape_cast %75 : vector<2x8xf32> to vector<2x8x1xf32>
    %77 = vector.broadcast %76 : vector<2x8x1xf32> to vector<2x8x8xf32>
    %78 = arith.subf %74, %77 : vector<2x8x8xf32>
    %79 = math.exp %78 : vector<2x8x8xf32>
    %cst_50 = arith.constant dense<0.000000e+00> : vector<2x8xf32>
    %80 = vector.multi_reduction <add>, %79, %cst_50 [2] : vector<2x8x8xf32> to vector<2x8xf32>
    %81 = vector.shape_cast %80 : vector<2x8xf32> to vector<2x8x1xf32>
    %82 = tpu.reciprocal %81 {approx = true} : vector<2x8x1xf32> -> vector<2x8x1xf32>
    %83 = vector.broadcast %82 : vector<2x8x1xf32> to vector<2x8x8xf32>
    %84 = arith.mulf %79, %83 : vector<2x8x8xf32>
    %85 = arith.truncf %84 : vector<2x8x8xf32> to vector<2x8x8xbf16>
    "tpu.trace_start"() <{level = 10 : i32, message = "bqk,bkd->bqd"}> : () -> ()
    %cst_51 = arith.constant dense<0.000000e+00> : vector<2x8x8xf32>
    %86 = tpu.matmul %85, %71, %cst_51 {dimension_numbers = #tpu.dot_dimension_numbers<[2], [1], [1], [2], [0, 0, 0, 1, 1, 2], [0], [0]>} : vector<2x8x8xbf16>, vector<2x8x8xbf16>, vector<2x8x8xf32> -> vector<2x8x8xf32>
    "tpu.trace_stop"() : () -> ()
    %87 = vector.shape_cast %86 : vector<2x8x8xf32> to vector<16x8xf32>
    %88 = arith.truncf %87 : vector<16x8xf32> to vector<16x8xbf16>
    %89 = vector.extract_strided_slice %6 {offsets = [8, 0], sizes = [8, 32], strides = [1, 1]} : vector<32x32xbf16> to vector<8x32xbf16>
    %cst_52 = arith.constant dense<0.000000e+00> : vector<16x32xf32>
    %90 = tpu.matmul %88, %89, %cst_52 {dimension_numbers = #tpu.dot_dimension_numbers<[1], [0], [0], [1], [0, 0, 1, 1], [], []>} : vector<16x8xbf16>, vector<8x32xbf16>, vector<16x32xf32> -> vector<16x32xf32>
    %91 = arith.addf %65, %90 : vector<16x32xf32>
    %92 = vector.extract_strided_slice %34 {offsets = [0, 0, 16], sizes = [2, 8, 8], strides = [1, 1, 1]} : vector<2x8x32xf32> to vector<2x8x8xf32>
    %93 = arith.truncf %92 : vector<2x8x8xf32> to vector<2x8x8xbf16>
    %94 = vector.extract_strided_slice %36 {offsets = [0, 0, 16], sizes = [2, 8, 8], strides = [1, 1, 1]} : vector<2x8x32xf32> to vector<2x8x8xf32>
    %95 = arith.truncf %94 : vector<2x8x8xf32> to vector<2x8x8xbf16>
    %96 = vector.extract_strided_slice %38 {offsets = [0, 0, 16], sizes = [2, 8, 8], strides = [1, 1, 1]} : vector<2x8x32xf32> to vector<2x8x8xf32>
    %97 = arith.truncf %96 : vector<2x8x8xf32> to vector<2x8x8xbf16>
    "tpu.trace_start"() <{level = 10 : i32, message = "bqd,bkd->bqk"}> : () -> ()
    %cst_53 = arith.constant dense<0.000000e+00> : vector<2x8x8xf32>
    %98 = tpu.matmul %93, %95, %cst_53 {dimension_numbers = #tpu.dot_dimension_numbers<[2], [2], [1], [1], [0, 0, 0, 1, 1, 1], [0], [0]>} : vector<2x8x8xbf16>, vector<2x8x8xbf16>, vector<2x8x8xf32> -> vector<2x8x8xf32>
    "tpu.trace_stop"() : () -> ()
    %99 = vector.broadcast %1 : vector<2x1x8xf32> to vector<2x8x8xf32>
    %100 = arith.addf %98, %99 : vector<2x8x8xf32>
    %cst_54 = arith.constant dense<0xFF800000> : vector<2x8xf32>
    %101 = vector.multi_reduction <maximumf>, %100, %cst_54 [2] : vector<2x8x8xf32> to vector<2x8xf32>
    %102 = vector.shape_cast %101 : vector<2x8xf32> to vector<2x8x1xf32>
    %103 = vector.broadcast %102 : vector<2x8x1xf32> to vector<2x8x8xf32>
    %104 = arith.subf %100, %103 : vector<2x8x8xf32>
    %105 = math.exp %104 : vector<2x8x8xf32>
    %cst_55 = arith.constant dense<0.000000e+00> : vector<2x8xf32>
    %106 = vector.multi_reduction <add>, %105, %cst_55 [2] : vector<2x8x8xf32> to vector<2x8xf32>
    %107 = vector.shape_cast %106 : vector<2x8xf32> to vector<2x8x1xf32>
    %108 = tpu.reciprocal %107 {approx = true} : vector<2x8x1xf32> -> vector<2x8x1xf32>
    %109 = vector.broadcast %108 : vector<2x8x1xf32> to vector<2x8x8xf32>
    %110 = arith.mulf %105, %109 : vector<2x8x8xf32>
    %111 = arith.truncf %110 : vector<2x8x8xf32> to vector<2x8x8xbf16>
    "tpu.trace_start"() <{level = 10 : i32, message = "bqk,bkd->bqd"}> : () -> ()
    %cst_56 = arith.constant dense<0.000000e+00> : vector<2x8x8xf32>
    %112 = tpu.matmul %111, %97, %cst_56 {dimension_numbers = #tpu.dot_dimension_numbers<[2], [1], [1], [2], [0, 0, 0, 1, 1, 2], [0], [0]>} : vector<2x8x8xbf16>, vector<2x8x8xbf16>, vector<2x8x8xf32> -> vector<2x8x8xf32>
    "tpu.trace_stop"() : () -> ()
    %113 = vector.shape_cast %112 : vector<2x8x8xf32> to vector<16x8xf32>
    %114 = arith.truncf %113 : vector<16x8xf32> to vector<16x8xbf16>
    %115 = vector.extract_strided_slice %6 {offsets = [16, 0], sizes = [8, 32], strides = [1, 1]} : vector<32x32xbf16> to vector<8x32xbf16>
    %cst_57 = arith.constant dense<0.000000e+00> : vector<16x32xf32>
    %116 = tpu.matmul %114, %115, %cst_57 {dimension_numbers = #tpu.dot_dimension_numbers<[1], [0], [0], [1], [0, 0, 1, 1], [], []>} : vector<16x8xbf16>, vector<8x32xbf16>, vector<16x32xf32> -> vector<16x32xf32>
    %117 = arith.addf %91, %116 : vector<16x32xf32>
    %118 = vector.extract_strided_slice %34 {offsets = [0, 0, 24], sizes = [2, 8, 8], strides = [1, 1, 1]} : vector<2x8x32xf32> to vector<2x8x8xf32>
    %119 = arith.truncf %118 : vector<2x8x8xf32> to vector<2x8x8xbf16>
    %120 = vector.extract_strided_slice %36 {offsets = [0, 0, 24], sizes = [2, 8, 8], strides = [1, 1, 1]} : vector<2x8x32xf32> to vector<2x8x8xf32>
    %121 = arith.truncf %120 : vector<2x8x8xf32> to vector<2x8x8xbf16>
    %122 = vector.extract_strided_slice %38 {offsets = [0, 0, 24], sizes = [2, 8, 8], strides = [1, 1, 1]} : vector<2x8x32xf32> to vector<2x8x8xf32>
    %123 = arith.truncf %122 : vector<2x8x8xf32> to vector<2x8x8xbf16>
    "tpu.trace_start"() <{level = 10 : i32, message = "bqd,bkd->bqk"}> : () -> ()
    %cst_58 = arith.constant dense<0.000000e+00> : vector<2x8x8xf32>
    %124 = tpu.matmul %119, %121, %cst_58 {dimension_numbers = #tpu.dot_dimension_numbers<[2], [2], [1], [1], [0, 0, 0, 1, 1, 1], [0], [0]>} : vector<2x8x8xbf16>, vector<2x8x8xbf16>, vector<2x8x8xf32> -> vector<2x8x8xf32>
    "tpu.trace_stop"() : () -> ()
    %125 = vector.broadcast %1 : vector<2x1x8xf32> to vector<2x8x8xf32>
    %126 = arith.addf %124, %125 : vector<2x8x8xf32>
    %cst_59 = arith.constant dense<0xFF800000> : vector<2x8xf32>
    %127 = vector.multi_reduction <maximumf>, %126, %cst_59 [2] : vector<2x8x8xf32> to vector<2x8xf32>
    %128 = vector.shape_cast %127 : vector<2x8xf32> to vector<2x8x1xf32>
    %129 = vector.broadcast %128 : vector<2x8x1xf32> to vector<2x8x8xf32>
    %130 = arith.subf %126, %129 : vector<2x8x8xf32>
    %131 = math.exp %130 : vector<2x8x8xf32>
    %cst_60 = arith.constant dense<0.000000e+00> : vector<2x8xf32>
    %132 = vector.multi_reduction <add>, %131, %cst_60 [2] : vector<2x8x8xf32> to vector<2x8xf32>
    %133 = vector.shape_cast %132 : vector<2x8xf32> to vector<2x8x1xf32>
    %134 = tpu.reciprocal %133 {approx = true} : vector<2x8x1xf32> -> vector<2x8x1xf32>
    %135 = vector.broadcast %134 : vector<2x8x1xf32> to vector<2x8x8xf32>
    %136 = arith.mulf %131, %135 : vector<2x8x8xf32>
    %137 = arith.truncf %136 : vector<2x8x8xf32> to vector<2x8x8xbf16>
    "tpu.trace_start"() <{level = 10 : i32, message = "bqk,bkd->bqd"}> : () -> ()
    %cst_61 = arith.constant dense<0.000000e+00> : vector<2x8x8xf32>
    %138 = tpu.matmul %137, %123, %cst_61 {dimension_numbers = #tpu.dot_dimension_numbers<[2], [1], [1], [2], [0, 0, 0, 1, 1, 2], [0], [0]>} : vector<2x8x8xbf16>, vector<2x8x8xbf16>, vector<2x8x8xf32> -> vector<2x8x8xf32>
    "tpu.trace_stop"() : () -> ()
    %139 = vector.shape_cast %138 : vector<2x8x8xf32> to vector<16x8xf32>
    %140 = arith.truncf %139 : vector<16x8xf32> to vector<16x8xbf16>
    %141 = vector.extract_strided_slice %6 {offsets = [24, 0], sizes = [8, 32], strides = [1, 1]} : vector<32x32xbf16> to vector<8x32xbf16>
    %cst_62 = arith.constant dense<0.000000e+00> : vector<16x32xf32>
    %142 = tpu.matmul %140, %141, %cst_62 {dimension_numbers = #tpu.dot_dimension_numbers<[1], [0], [0], [1], [0, 0, 1, 1], [], []>} : vector<16x8xbf16>, vector<8x32xbf16>, vector<16x32xf32> -> vector<16x32xf32>
    %143 = arith.addf %117, %142 : vector<16x32xf32>
    %144 = vector.broadcast %14 : vector<1x32xf32> to vector<16x32xf32>
    %145 = arith.addf %143, %144 : vector<16x32xf32>
    %146 = arith.addf %2, %145 : vector<16x32xf32>
    %cst_63 = arith.constant dense<0.000000e+00> : vector<16xf32>
    %147 = vector.multi_reduction <add>, %146, %cst_63 [1] : vector<16x32xf32> to vector<16xf32>
    %148 = vector.shape_cast %147 : vector<16xf32> to vector<16x1xf32>
    %cst_64 = arith.constant 3.200000e+01 : f32
    %149 = vector.broadcast %cst_64 : f32 to vector<16x1xf32>
    %150 = arith.divf %148, %149 : vector<16x1xf32>
    %151 = vector.broadcast %150 : vector<16x1xf32> to vector<16x32xf32>
    %152 = arith.subf %146, %151 : vector<16x32xf32>
    %153 = arith.mulf %152, %152 : vector<16x32xf32>
    %cst_65 = arith.constant dense<0.000000e+00> : vector<16xf32>
    %154 = vector.multi_reduction <add>, %153, %cst_65 [1] : vector<16x32xf32> to vector<16xf32>
    %155 = vector.shape_cast %154 : vector<16xf32> to vector<16x1xf32>
    %cst_66 = arith.constant 3.200000e+01 : f32
    %156 = vector.broadcast %cst_66 : f32 to vector<16x1xf32>
    %157 = arith.divf %155, %156 : vector<16x1xf32>
    %158 = vector.broadcast %150 : vector<16x1xf32> to vector<16x32xf32>
    %159 = arith.subf %146, %158 : vector<16x32xf32>
    %cst_67 = arith.constant 9.99999974E-6 : f32
    %160 = vector.broadcast %cst_67 : f32 to vector<16x1xf32>
    %161 = arith.addf %157, %160 : vector<16x1xf32>
    %162 = math.rsqrt %161 : vector<16x1xf32>
    %163 = vector.broadcast %162 : vector<16x1xf32> to vector<16x32xf32>
    %164 = arith.mulf %159, %163 : vector<16x32xf32>
    %165 = vector.broadcast %16 : vector<1x32xf32> to vector<16x32xf32>
    %166 = arith.mulf %164, %165 : vector<16x32xf32>
    %167 = vector.broadcast %18 : vector<1x32xf32> to vector<16x32xf32>
    %168 = arith.addf %166, %167 : vector<16x32xf32>
    %169 = arith.truncf %168 : vector<16x32xf32> to vector<16x32xbf16>
    %cst_68 = arith.constant dense<0.000000e+00> : vector<16x128xf32>
    %170 = tpu.matmul %169, %8, %cst_68 {dimension_numbers = #tpu.dot_dimension_numbers<[1], [0], [0], [1], [0, 0, 1, 1], [], []>} : vector<16x32xbf16>, vector<32x128xbf16>, vector<16x128xf32> -> vector<16x128xf32>
    %171 = vector.broadcast %20 : vector<1x128xf32> to vector<16x128xf32>
    %172 = arith.addf %170, %171 : vector<16x128xf32>
    %cst_69 = arith.constant 0.000000e+00 : f32
    %173 = vector.broadcast %cst_69 : f32 to vector<16x128xf32>
    %174 = arith.maximumf %172, %173 : vector<16x128xf32>
    %175 = arith.truncf %174 : vector<16x128xf32> to vector<16x128xbf16>
    %cst_70 = arith.constant dense<0.000000e+00> : vector<16x32xf32>
    %176 = tpu.matmul %175, %10, %cst_70 {dimension_numbers = #tpu.dot_dimension_numbers<[1], [0], [0], [1], [0, 0, 1, 1], [], []>} : vector<16x128xbf16>, vector<128x32xbf16>, vector<16x32xf32> -> vector<16x32xf32>
    %177 = vector.broadcast %22 : vector<1x32xf32> to vector<16x32xf32>
    %178 = arith.addf %176, %177 : vector<16x32xf32>
    %179 = arith.addf %168, %178 : vector<16x32xf32>
    %cst_71 = arith.constant dense<0.000000e+00> : vector<16xf32>
    %180 = vector.multi_reduction <add>, %179, %cst_71 [1] : vector<16x32xf32> to vector<16xf32>
    %181 = vector.shape_cast %180 : vector<16xf32> to vector<16x1xf32>
    %cst_72 = arith.constant 3.200000e+01 : f32
    %182 = vector.broadcast %cst_72 : f32 to vector<16x1xf32>
    %183 = arith.divf %181, %182 : vector<16x1xf32>
    %184 = vector.broadcast %183 : vector<16x1xf32> to vector<16x32xf32>
    %185 = arith.subf %179, %184 : vector<16x32xf32>
    %186 = arith.mulf %185, %185 : vector<16x32xf32>
    %cst_73 = arith.constant dense<0.000000e+00> : vector<16xf32>
    %187 = vector.multi_reduction <add>, %186, %cst_73 [1] : vector<16x32xf32> to vector<16xf32>
    %188 = vector.shape_cast %187 : vector<16xf32> to vector<16x1xf32>
    %cst_74 = arith.constant 3.200000e+01 : f32
    %189 = vector.broadcast %cst_74 : f32 to vector<16x1xf32>
    %190 = arith.divf %188, %189 : vector<16x1xf32>
    %191 = vector.broadcast %183 : vector<16x1xf32> to vector<16x32xf32>
    %192 = arith.subf %179, %191 : vector<16x32xf32>
    %cst_75 = arith.constant 9.99999974E-6 : f32
    %193 = vector.broadcast %cst_75 : f32 to vector<16x1xf32>
    %194 = arith.addf %190, %193 : vector<16x1xf32>
    %195 = math.rsqrt %194 : vector<16x1xf32>
    %196 = vector.broadcast %195 : vector<16x1xf32> to vector<16x32xf32>
    %197 = arith.mulf %192, %196 : vector<16x32xf32>
    %198 = vector.broadcast %24 : vector<1x32xf32> to vector<16x32xf32>
    %199 = arith.mulf %197, %198 : vector<16x32xf32>
    %200 = vector.broadcast %26 : vector<1x32xf32> to vector<16x32xf32>
    %201 = arith.addf %199, %200 : vector<16x32xf32>
    %c1 = arith.constant 1 : index
    %c0_76 = arith.constant 0 : index
    %c0_77 = arith.constant 0 : index
    %202 = vector.load %arg2[%c1, %c0_76, %c0_77] : memref<2x32x96xbf16, #tpu.memory_space<vmem>>, vector<1x32x96xbf16>
    %203 = vector.shape_cast %202 : vector<1x32x96xbf16> to vector<32x96xbf16>
    %c1_78 = arith.constant 1 : index
    %c0_79 = arith.constant 0 : index
    %c0_80 = arith.constant 0 : index
    %204 = vector.load %arg4[%c1_78, %c0_79, %c0_80] : memref<2x32x32xbf16, #tpu.memory_space<vmem>>, vector<1x32x32xbf16>
    %205 = vector.shape_cast %204 : vector<1x32x32xbf16> to vector<32x32xbf16>
    %c1_81 = arith.constant 1 : index
    %c0_82 = arith.constant 0 : index
    %c0_83 = arith.constant 0 : index
    %206 = vector.load %arg8[%c1_81, %c0_82, %c0_83] : memref<2x32x128xbf16, #tpu.memory_space<vmem>>, vector<1x32x128xbf16>
    %207 = vector.shape_cast %206 : vector<1x32x128xbf16> to vector<32x128xbf16>
    %c1_84 = arith.constant 1 : index
    %c0_85 = arith.constant 0 : index
    %c0_86 = arith.constant 0 : index
    %208 = vector.load %arg10[%c1_84, %c0_85, %c0_86] : memref<2x128x32xbf16, #tpu.memory_space<vmem>>, vector<1x128x32xbf16>
    %209 = vector.shape_cast %208 : vector<1x128x32xbf16> to vector<128x32xbf16>
    %c1_87 = arith.constant 1 : index
    %c0_88 = arith.constant 0 : index
    %c0_89 = arith.constant 0 : index
    %210 = vector.load %arg3[%c1_87, %c0_88, %c0_89] : memref<2x1x96xf32, #tpu.memory_space<vmem>>, vector<1x1x96xf32>
    %211 = vector.shape_cast %210 : vector<1x1x96xf32> to vector<1x96xf32>
    %c1_90 = arith.constant 1 : index
    %c0_91 = arith.constant 0 : index
    %c0_92 = arith.constant 0 : index
    %212 = vector.load %arg5[%c1_90, %c0_91, %c0_92] : memref<2x1x32xf32, #tpu.memory_space<vmem>>, vector<1x1x32xf32>
    %213 = vector.shape_cast %212 : vector<1x1x32xf32> to vector<1x32xf32>
    %c1_93 = arith.constant 1 : index
    %c0_94 = arith.constant 0 : index
    %c0_95 = arith.constant 0 : index
    %214 = vector.load %arg6[%c1_93, %c0_94, %c0_95] : memref<2x1x32xf32, #tpu.memory_space<vmem>>, vector<1x1x32xf32>
    %215 = vector.shape_cast %214 : vector<1x1x32xf32> to vector<1x32xf32>
    %c1_96 = arith.constant 1 : index
    %c0_97 = arith.constant 0 : index
    %c0_98 = arith.constant 0 : index
    %216 = vector.load %arg7[%c1_96, %c0_97, %c0_98] : memref<2x1x32xf32, #tpu.memory_space<vmem>>, vector<1x1x32xf32>
    %217 = vector.shape_cast %216 : vector<1x1x32xf32> to vector<1x32xf32>
    %c1_99 = arith.constant 1 : index
    %c0_100 = arith.constant 0 : index
    %c0_101 = arith.constant 0 : index
    %218 = vector.load %arg9[%c1_99, %c0_100, %c0_101] : memref<2x1x128xf32, #tpu.memory_space<vmem>>, vector<1x1x128xf32>
    %219 = vector.shape_cast %218 : vector<1x1x128xf32> to vector<1x128xf32>
    %c1_102 = arith.constant 1 : index
    %c0_103 = arith.constant 0 : index
    %c0_104 = arith.constant 0 : index
    %220 = vector.load %arg11[%c1_102, %c0_103, %c0_104] : memref<2x1x32xf32, #tpu.memory_space<vmem>>, vector<1x1x32xf32>
    %221 = vector.shape_cast %220 : vector<1x1x32xf32> to vector<1x32xf32>
    %c1_105 = arith.constant 1 : index
    %c0_106 = arith.constant 0 : index
    %c0_107 = arith.constant 0 : index
    %222 = vector.load %arg12[%c1_105, %c0_106, %c0_107] : memref<2x1x32xf32, #tpu.memory_space<vmem>>, vector<1x1x32xf32>
    %223 = vector.shape_cast %222 : vector<1x1x32xf32> to vector<1x32xf32>
    %c1_108 = arith.constant 1 : index
    %c0_109 = arith.constant 0 : index
    %c0_110 = arith.constant 0 : index
    %224 = vector.load %arg13[%c1_108, %c0_109, %c0_110] : memref<2x1x32xf32, #tpu.memory_space<vmem>>, vector<1x1x32xf32>
    %225 = vector.shape_cast %224 : vector<1x1x32xf32> to vector<1x32xf32>
    %226 = arith.truncf %201 : vector<16x32xf32> to vector<16x32xbf16>
    %cst_111 = arith.constant dense<0.000000e+00> : vector<16x96xf32>
    %227 = tpu.matmul %226, %203, %cst_111 {dimension_numbers = #tpu.dot_dimension_numbers<[1], [0], [0], [1], [0, 0, 1, 1], [], []>} : vector<16x32xbf16>, vector<32x96xbf16>, vector<16x96xf32> -> vector<16x96xf32>
    %228 = vector.broadcast %211 : vector<1x96xf32> to vector<16x96xf32>
    %229 = arith.addf %227, %228 : vector<16x96xf32>
    %230 = vector.extract_strided_slice %229 {offsets = [0, 0], sizes = [16, 32], strides = [1, 1]} : vector<16x96xf32> to vector<16x32xf32>
    %cst_112 = arith.constant 0.353553385 : f32
    %231 = vector.broadcast %cst_112 : f32 to vector<16x32xf32>
    %232 = arith.mulf %230, %231 : vector<16x32xf32>
    %233 = vector.shape_cast %232 : vector<16x32xf32> to vector<2x8x32xf32>
    %234 = vector.extract_strided_slice %229 {offsets = [0, 32], sizes = [16, 32], strides = [1, 1]} : vector<16x96xf32> to vector<16x32xf32>
    %235 = vector.shape_cast %234 : vector<16x32xf32> to vector<2x8x32xf32>
    %236 = vector.extract_strided_slice %229 {offsets = [0, 64], sizes = [16, 32], strides = [1, 1]} : vector<16x96xf32> to vector<16x32xf32>
    %237 = vector.shape_cast %236 : vector<16x32xf32> to vector<2x8x32xf32>
    %cst_113 = arith.constant 0.000000e+00 : f32
    %238 = vector.broadcast %cst_113 : f32 to vector<16x32xf32>
    %239 = vector.extract_strided_slice %233 {offsets = [0, 0, 0], sizes = [2, 8, 8], strides = [1, 1, 1]} : vector<2x8x32xf32> to vector<2x8x8xf32>
    %240 = arith.truncf %239 : vector<2x8x8xf32> to vector<2x8x8xbf16>
    %241 = vector.extract_strided_slice %235 {offsets = [0, 0, 0], sizes = [2, 8, 8], strides = [1, 1, 1]} : vector<2x8x32xf32> to vector<2x8x8xf32>
    %242 = arith.truncf %241 : vector<2x8x8xf32> to vector<2x8x8xbf16>
    %243 = vector.extract_strided_slice %237 {offsets = [0, 0, 0], sizes = [2, 8, 8], strides = [1, 1, 1]} : vector<2x8x32xf32> to vector<2x8x8xf32>
    %244 = arith.truncf %243 : vector<2x8x8xf32> to vector<2x8x8xbf16>
    "tpu.trace_start"() <{level = 10 : i32, message = "bqd,bkd->bqk"}> : () -> ()
    %cst_114 = arith.constant dense<0.000000e+00> : vector<2x8x8xf32>
    %245 = tpu.matmul %240, %242, %cst_114 {dimension_numbers = #tpu.dot_dimension_numbers<[2], [2], [1], [1], [0, 0, 0, 1, 1, 1], [0], [0]>} : vector<2x8x8xbf16>, vector<2x8x8xbf16>, vector<2x8x8xf32> -> vector<2x8x8xf32>
    "tpu.trace_stop"() : () -> ()
    %246 = vector.broadcast %1 : vector<2x1x8xf32> to vector<2x8x8xf32>
    %247 = arith.addf %245, %246 : vector<2x8x8xf32>
    %cst_115 = arith.constant dense<0xFF800000> : vector<2x8xf32>
    %248 = vector.multi_reduction <maximumf>, %247, %cst_115 [2] : vector<2x8x8xf32> to vector<2x8xf32>
    %249 = vector.shape_cast %248 : vector<2x8xf32> to vector<2x8x1xf32>
    %250 = vector.broadcast %249 : vector<2x8x1xf32> to vector<2x8x8xf32>
    %251 = arith.subf %247, %250 : vector<2x8x8xf32>
    %252 = math.exp %251 : vector<2x8x8xf32>
    %cst_116 = arith.constant dense<0.000000e+00> : vector<2x8xf32>
    %253 = vector.multi_reduction <add>, %252, %cst_116 [2] : vector<2x8x8xf32> to vector<2x8xf32>
    %254 = vector.shape_cast %253 : vector<2x8xf32> to vector<2x8x1xf32>
    %255 = tpu.reciprocal %254 {approx = true} : vector<2x8x1xf32> -> vector<2x8x1xf32>
    %256 = vector.broadcast %255 : vector<2x8x1xf32> to vector<2x8x8xf32>
    %257 = arith.mulf %252, %256 : vector<2x8x8xf32>
    %258 = arith.truncf %257 : vector<2x8x8xf32> to vector<2x8x8xbf16>
    "tpu.trace_start"() <{level = 10 : i32, message = "bqk,bkd->bqd"}> : () -> ()
    %cst_117 = arith.constant dense<0.000000e+00> : vector<2x8x8xf32>
    %259 = tpu.matmul %258, %244, %cst_117 {dimension_numbers = #tpu.dot_dimension_numbers<[2], [1], [1], [2], [0, 0, 0, 1, 1, 2], [0], [0]>} : vector<2x8x8xbf16>, vector<2x8x8xbf16>, vector<2x8x8xf32> -> vector<2x8x8xf32>
    "tpu.trace_stop"() : () -> ()
    %260 = vector.shape_cast %259 : vector<2x8x8xf32> to vector<16x8xf32>
    %261 = arith.truncf %260 : vector<16x8xf32> to vector<16x8xbf16>
    %262 = vector.extract_strided_slice %205 {offsets = [0, 0], sizes = [8, 32], strides = [1, 1]} : vector<32x32xbf16> to vector<8x32xbf16>
    %cst_118 = arith.constant dense<0.000000e+00> : vector<16x32xf32>
    %263 = tpu.matmul %261, %262, %cst_118 {dimension_numbers = #tpu.dot_dimension_numbers<[1], [0], [0], [1], [0, 0, 1, 1], [], []>} : vector<16x8xbf16>, vector<8x32xbf16>, vector<16x32xf32> -> vector<16x32xf32>
    %264 = arith.addf %238, %263 : vector<16x32xf32>
    %265 = vector.extract_strided_slice %233 {offsets = [0, 0, 8], sizes = [2, 8, 8], strides = [1, 1, 1]} : vector<2x8x32xf32> to vector<2x8x8xf32>
    %266 = arith.truncf %265 : vector<2x8x8xf32> to vector<2x8x8xbf16>
    %267 = vector.extract_strided_slice %235 {offsets = [0, 0, 8], sizes = [2, 8, 8], strides = [1, 1, 1]} : vector<2x8x32xf32> to vector<2x8x8xf32>
    %268 = arith.truncf %267 : vector<2x8x8xf32> to vector<2x8x8xbf16>
    %269 = vector.extract_strided_slice %237 {offsets = [0, 0, 8], sizes = [2, 8, 8], strides = [1, 1, 1]} : vector<2x8x32xf32> to vector<2x8x8xf32>
    %270 = arith.truncf %269 : vector<2x8x8xf32> to vector<2x8x8xbf16>
    "tpu.trace_start"() <{level = 10 : i32, message = "bqd,bkd->bqk"}> : () -> ()
    %cst_119 = arith.constant dense<0.000000e+00> : vector<2x8x8xf32>
    %271 = tpu.matmul %266, %268, %cst_119 {dimension_numbers = #tpu.dot_dimension_numbers<[2], [2], [1], [1], [0, 0, 0, 1, 1, 1], [0], [0]>} : vector<2x8x8xbf16>, vector<2x8x8xbf16>, vector<2x8x8xf32> -> vector<2x8x8xf32>
    "tpu.trace_stop"() : () -> ()
    %272 = vector.broadcast %1 : vector<2x1x8xf32> to vector<2x8x8xf32>
    %273 = arith.addf %271, %272 : vector<2x8x8xf32>
    %cst_120 = arith.constant dense<0xFF800000> : vector<2x8xf32>
    %274 = vector.multi_reduction <maximumf>, %273, %cst_120 [2] : vector<2x8x8xf32> to vector<2x8xf32>
    %275 = vector.shape_cast %274 : vector<2x8xf32> to vector<2x8x1xf32>
    %276 = vector.broadcast %275 : vector<2x8x1xf32> to vector<2x8x8xf32>
    %277 = arith.subf %273, %276 : vector<2x8x8xf32>
    %278 = math.exp %277 : vector<2x8x8xf32>
    %cst_121 = arith.constant dense<0.000000e+00> : vector<2x8xf32>
    %279 = vector.multi_reduction <add>, %278, %cst_121 [2] : vector<2x8x8xf32> to vector<2x8xf32>
    %280 = vector.shape_cast %279 : vector<2x8xf32> to vector<2x8x1xf32>
    %281 = tpu.reciprocal %280 {approx = true} : vector<2x8x1xf32> -> vector<2x8x1xf32>
    %282 = vector.broadcast %281 : vector<2x8x1xf32> to vector<2x8x8xf32>
    %283 = arith.mulf %278, %282 : vector<2x8x8xf32>
    %284 = arith.truncf %283 : vector<2x8x8xf32> to vector<2x8x8xbf16>
    "tpu.trace_start"() <{level = 10 : i32, message = "bqk,bkd->bqd"}> : () -> ()
    %cst_122 = arith.constant dense<0.000000e+00> : vector<2x8x8xf32>
    %285 = tpu.matmul %284, %270, %cst_122 {dimension_numbers = #tpu.dot_dimension_numbers<[2], [1], [1], [2], [0, 0, 0, 1, 1, 2], [0], [0]>} : vector<2x8x8xbf16>, vector<2x8x8xbf16>, vector<2x8x8xf32> -> vector<2x8x8xf32>
    "tpu.trace_stop"() : () -> ()
    %286 = vector.shape_cast %285 : vector<2x8x8xf32> to vector<16x8xf32>
    %287 = arith.truncf %286 : vector<16x8xf32> to vector<16x8xbf16>
    %288 = vector.extract_strided_slice %205 {offsets = [8, 0], sizes = [8, 32], strides = [1, 1]} : vector<32x32xbf16> to vector<8x32xbf16>
    %cst_123 = arith.constant dense<0.000000e+00> : vector<16x32xf32>
    %289 = tpu.matmul %287, %288, %cst_123 {dimension_numbers = #tpu.dot_dimension_numbers<[1], [0], [0], [1], [0, 0, 1, 1], [], []>} : vector<16x8xbf16>, vector<8x32xbf16>, vector<16x32xf32> -> vector<16x32xf32>
    %290 = arith.addf %264, %289 : vector<16x32xf32>
    %291 = vector.extract_strided_slice %233 {offsets = [0, 0, 16], sizes = [2, 8, 8], strides = [1, 1, 1]} : vector<2x8x32xf32> to vector<2x8x8xf32>
    %292 = arith.truncf %291 : vector<2x8x8xf32> to vector<2x8x8xbf16>
    %293 = vector.extract_strided_slice %235 {offsets = [0, 0, 16], sizes = [2, 8, 8], strides = [1, 1, 1]} : vector<2x8x32xf32> to vector<2x8x8xf32>
    %294 = arith.truncf %293 : vector<2x8x8xf32> to vector<2x8x8xbf16>
    %295 = vector.extract_strided_slice %237 {offsets = [0, 0, 16], sizes = [2, 8, 8], strides = [1, 1, 1]} : vector<2x8x32xf32> to vector<2x8x8xf32>
    %296 = arith.truncf %295 : vector<2x8x8xf32> to vector<2x8x8xbf16>
    "tpu.trace_start"() <{level = 10 : i32, message = "bqd,bkd->bqk"}> : () -> ()
    %cst_124 = arith.constant dense<0.000000e+00> : vector<2x8x8xf32>
    %297 = tpu.matmul %292, %294, %cst_124 {dimension_numbers = #tpu.dot_dimension_numbers<[2], [2], [1], [1], [0, 0, 0, 1, 1, 1], [0], [0]>} : vector<2x8x8xbf16>, vector<2x8x8xbf16>, vector<2x8x8xf32> -> vector<2x8x8xf32>
    "tpu.trace_stop"() : () -> ()
    %298 = vector.broadcast %1 : vector<2x1x8xf32> to vector<2x8x8xf32>
    %299 = arith.addf %297, %298 : vector<2x8x8xf32>
    %cst_125 = arith.constant dense<0xFF800000> : vector<2x8xf32>
    %300 = vector.multi_reduction <maximumf>, %299, %cst_125 [2] : vector<2x8x8xf32> to vector<2x8xf32>
    %301 = vector.shape_cast %300 : vector<2x8xf32> to vector<2x8x1xf32>
    %302 = vector.broadcast %301 : vector<2x8x1xf32> to vector<2x8x8xf32>
    %303 = arith.subf %299, %302 : vector<2x8x8xf32>
    %304 = math.exp %303 : vector<2x8x8xf32>
    %cst_126 = arith.constant dense<0.000000e+00> : vector<2x8xf32>
    %305 = vector.multi_reduction <add>, %304, %cst_126 [2] : vector<2x8x8xf32> to vector<2x8xf32>
    %306 = vector.shape_cast %305 : vector<2x8xf32> to vector<2x8x1xf32>
    %307 = tpu.reciprocal %306 {approx = true} : vector<2x8x1xf32> -> vector<2x8x1xf32>
    %308 = vector.broadcast %307 : vector<2x8x1xf32> to vector<2x8x8xf32>
    %309 = arith.mulf %304, %308 : vector<2x8x8xf32>
    %310 = arith.truncf %309 : vector<2x8x8xf32> to vector<2x8x8xbf16>
    "tpu.trace_start"() <{level = 10 : i32, message = "bqk,bkd->bqd"}> : () -> ()
    %cst_127 = arith.constant dense<0.000000e+00> : vector<2x8x8xf32>
    %311 = tpu.matmul %310, %296, %cst_127 {dimension_numbers = #tpu.dot_dimension_numbers<[2], [1], [1], [2], [0, 0, 0, 1, 1, 2], [0], [0]>} : vector<2x8x8xbf16>, vector<2x8x8xbf16>, vector<2x8x8xf32> -> vector<2x8x8xf32>
    "tpu.trace_stop"() : () -> ()
    %312 = vector.shape_cast %311 : vector<2x8x8xf32> to vector<16x8xf32>
    %313 = arith.truncf %312 : vector<16x8xf32> to vector<16x8xbf16>
    %314 = vector.extract_strided_slice %205 {offsets = [16, 0], sizes = [8, 32], strides = [1, 1]} : vector<32x32xbf16> to vector<8x32xbf16>
    %cst_128 = arith.constant dense<0.000000e+00> : vector<16x32xf32>
    %315 = tpu.matmul %313, %314, %cst_128 {dimension_numbers = #tpu.dot_dimension_numbers<[1], [0], [0], [1], [0, 0, 1, 1], [], []>} : vector<16x8xbf16>, vector<8x32xbf16>, vector<16x32xf32> -> vector<16x32xf32>
    %316 = arith.addf %290, %315 : vector<16x32xf32>
    %317 = vector.extract_strided_slice %233 {offsets = [0, 0, 24], sizes = [2, 8, 8], strides = [1, 1, 1]} : vector<2x8x32xf32> to vector<2x8x8xf32>
    %318 = arith.truncf %317 : vector<2x8x8xf32> to vector<2x8x8xbf16>
    %319 = vector.extract_strided_slice %235 {offsets = [0, 0, 24], sizes = [2, 8, 8], strides = [1, 1, 1]} : vector<2x8x32xf32> to vector<2x8x8xf32>
    %320 = arith.truncf %319 : vector<2x8x8xf32> to vector<2x8x8xbf16>
    %321 = vector.extract_strided_slice %237 {offsets = [0, 0, 24], sizes = [2, 8, 8], strides = [1, 1, 1]} : vector<2x8x32xf32> to vector<2x8x8xf32>
    %322 = arith.truncf %321 : vector<2x8x8xf32> to vector<2x8x8xbf16>
    "tpu.trace_start"() <{level = 10 : i32, message = "bqd,bkd->bqk"}> : () -> ()
    %cst_129 = arith.constant dense<0.000000e+00> : vector<2x8x8xf32>
    %323 = tpu.matmul %318, %320, %cst_129 {dimension_numbers = #tpu.dot_dimension_numbers<[2], [2], [1], [1], [0, 0, 0, 1, 1, 1], [0], [0]>} : vector<2x8x8xbf16>, vector<2x8x8xbf16>, vector<2x8x8xf32> -> vector<2x8x8xf32>
    "tpu.trace_stop"() : () -> ()
    %324 = vector.broadcast %1 : vector<2x1x8xf32> to vector<2x8x8xf32>
    %325 = arith.addf %323, %324 : vector<2x8x8xf32>
    %cst_130 = arith.constant dense<0xFF800000> : vector<2x8xf32>
    %326 = vector.multi_reduction <maximumf>, %325, %cst_130 [2] : vector<2x8x8xf32> to vector<2x8xf32>
    %327 = vector.shape_cast %326 : vector<2x8xf32> to vector<2x8x1xf32>
    %328 = vector.broadcast %327 : vector<2x8x1xf32> to vector<2x8x8xf32>
    %329 = arith.subf %325, %328 : vector<2x8x8xf32>
    %330 = math.exp %329 : vector<2x8x8xf32>
    %cst_131 = arith.constant dense<0.000000e+00> : vector<2x8xf32>
    %331 = vector.multi_reduction <add>, %330, %cst_131 [2] : vector<2x8x8xf32> to vector<2x8xf32>
    %332 = vector.shape_cast %331 : vector<2x8xf32> to vector<2x8x1xf32>
    %333 = tpu.reciprocal %332 {approx = true} : vector<2x8x1xf32> -> vector<2x8x1xf32>
    %334 = vector.broadcast %333 : vector<2x8x1xf32> to vector<2x8x8xf32>
    %335 = arith.mulf %330, %334 : vector<2x8x8xf32>
    %336 = arith.truncf %335 : vector<2x8x8xf32> to vector<2x8x8xbf16>
    "tpu.trace_start"() <{level = 10 : i32, message = "bqk,bkd->bqd"}> : () -> ()
    %cst_132 = arith.constant dense<0.000000e+00> : vector<2x8x8xf32>
    %337 = tpu.matmul %336, %322, %cst_132 {dimension_numbers = #tpu.dot_dimension_numbers<[2], [1], [1], [2], [0, 0, 0, 1, 1, 2], [0], [0]>} : vector<2x8x8xbf16>, vector<2x8x8xbf16>, vector<2x8x8xf32> -> vector<2x8x8xf32>
    "tpu.trace_stop"() : () -> ()
    %338 = vector.shape_cast %337 : vector<2x8x8xf32> to vector<16x8xf32>
    %339 = arith.truncf %338 : vector<16x8xf32> to vector<16x8xbf16>
    %340 = vector.extract_strided_slice %205 {offsets = [24, 0], sizes = [8, 32], strides = [1, 1]} : vector<32x32xbf16> to vector<8x32xbf16>
    %cst_133 = arith.constant dense<0.000000e+00> : vector<16x32xf32>
    %341 = tpu.matmul %339, %340, %cst_133 {dimension_numbers = #tpu.dot_dimension_numbers<[1], [0], [0], [1], [0, 0, 1, 1], [], []>} : vector<16x8xbf16>, vector<8x32xbf16>, vector<16x32xf32> -> vector<16x32xf32>
    %342 = arith.addf %316, %341 : vector<16x32xf32>
    %343 = vector.broadcast %213 : vector<1x32xf32> to vector<16x32xf32>
    %344 = arith.addf %342, %343 : vector<16x32xf32>
    %345 = arith.addf %201, %344 : vector<16x32xf32>
    %cst_134 = arith.constant dense<0.000000e+00> : vector<16xf32>
    %346 = vector.multi_reduction <add>, %345, %cst_134 [1] : vector<16x32xf32> to vector<16xf32>
    %347 = vector.shape_cast %346 : vector<16xf32> to vector<16x1xf32>
    %cst_135 = arith.constant 3.200000e+01 : f32
    %348 = vector.broadcast %cst_135 : f32 to vector<16x1xf32>
    %349 = arith.divf %347, %348 : vector<16x1xf32>
    %350 = vector.broadcast %349 : vector<16x1xf32> to vector<16x32xf32>
    %351 = arith.subf %345, %350 : vector<16x32xf32>
    %352 = arith.mulf %351, %351 : vector<16x32xf32>
    %cst_136 = arith.constant dense<0.000000e+00> : vector<16xf32>
    %353 = vector.multi_reduction <add>, %352, %cst_136 [1] : vector<16x32xf32> to vector<16xf32>
    %354 = vector.shape_cast %353 : vector<16xf32> to vector<16x1xf32>
    %cst_137 = arith.constant 3.200000e+01 : f32
    %355 = vector.broadcast %cst_137 : f32 to vector<16x1xf32>
    %356 = arith.divf %354, %355 : vector<16x1xf32>
    %357 = vector.broadcast %349 : vector<16x1xf32> to vector<16x32xf32>
    %358 = arith.subf %345, %357 : vector<16x32xf32>
    %cst_138 = arith.constant 9.99999974E-6 : f32
    %359 = vector.broadcast %cst_138 : f32 to vector<16x1xf32>
    %360 = arith.addf %356, %359 : vector<16x1xf32>
    %361 = math.rsqrt %360 : vector<16x1xf32>
    %362 = vector.broadcast %361 : vector<16x1xf32> to vector<16x32xf32>
    %363 = arith.mulf %358, %362 : vector<16x32xf32>
    %364 = vector.broadcast %215 : vector<1x32xf32> to vector<16x32xf32>
    %365 = arith.mulf %363, %364 : vector<16x32xf32>
    %366 = vector.broadcast %217 : vector<1x32xf32> to vector<16x32xf32>
    %367 = arith.addf %365, %366 : vector<16x32xf32>
    %368 = arith.truncf %367 : vector<16x32xf32> to vector<16x32xbf16>
    %cst_139 = arith.constant dense<0.000000e+00> : vector<16x128xf32>
    %369 = tpu.matmul %368, %207, %cst_139 {dimension_numbers = #tpu.dot_dimension_numbers<[1], [0], [0], [1], [0, 0, 1, 1], [], []>} : vector<16x32xbf16>, vector<32x128xbf16>, vector<16x128xf32> -> vector<16x128xf32>
    %370 = vector.broadcast %219 : vector<1x128xf32> to vector<16x128xf32>
    %371 = arith.addf %369, %370 : vector<16x128xf32>
    %cst_140 = arith.constant 0.000000e+00 : f32
    %372 = vector.broadcast %cst_140 : f32 to vector<16x128xf32>
    %373 = arith.maximumf %371, %372 : vector<16x128xf32>
    %374 = arith.truncf %373 : vector<16x128xf32> to vector<16x128xbf16>
    %cst_141 = arith.constant dense<0.000000e+00> : vector<16x32xf32>
    %375 = tpu.matmul %374, %209, %cst_141 {dimension_numbers = #tpu.dot_dimension_numbers<[1], [0], [0], [1], [0, 0, 1, 1], [], []>} : vector<16x128xbf16>, vector<128x32xbf16>, vector<16x32xf32> -> vector<16x32xf32>
    %376 = vector.broadcast %221 : vector<1x32xf32> to vector<16x32xf32>
    %377 = arith.addf %375, %376 : vector<16x32xf32>
    %378 = arith.addf %367, %377 : vector<16x32xf32>
    %cst_142 = arith.constant dense<0.000000e+00> : vector<16xf32>
    %379 = vector.multi_reduction <add>, %378, %cst_142 [1] : vector<16x32xf32> to vector<16xf32>
    %380 = vector.shape_cast %379 : vector<16xf32> to vector<16x1xf32>
    %cst_143 = arith.constant 3.200000e+01 : f32
    %381 = vector.broadcast %cst_143 : f32 to vector<16x1xf32>
    %382 = arith.divf %380, %381 : vector<16x1xf32>
    %383 = vector.broadcast %382 : vector<16x1xf32> to vector<16x32xf32>
    %384 = arith.subf %378, %383 : vector<16x32xf32>
    %385 = arith.mulf %384, %384 : vector<16x32xf32>
    %cst_144 = arith.constant dense<0.000000e+00> : vector<16xf32>
    %386 = vector.multi_reduction <add>, %385, %cst_144 [1] : vector<16x32xf32> to vector<16xf32>
    %387 = vector.shape_cast %386 : vector<16xf32> to vector<16x1xf32>
    %cst_145 = arith.constant 3.200000e+01 : f32
    %388 = vector.broadcast %cst_145 : f32 to vector<16x1xf32>
    %389 = arith.divf %387, %388 : vector<16x1xf32>
    %390 = vector.broadcast %382 : vector<16x1xf32> to vector<16x32xf32>
    %391 = arith.subf %378, %390 : vector<16x32xf32>
    %cst_146 = arith.constant 9.99999974E-6 : f32
    %392 = vector.broadcast %cst_146 : f32 to vector<16x1xf32>
    %393 = arith.addf %389, %392 : vector<16x1xf32>
    %394 = math.rsqrt %393 : vector<16x1xf32>
    %395 = vector.broadcast %394 : vector<16x1xf32> to vector<16x32xf32>
    %396 = arith.mulf %391, %395 : vector<16x32xf32>
    %397 = vector.broadcast %223 : vector<1x32xf32> to vector<16x32xf32>
    %398 = arith.mulf %396, %397 : vector<16x32xf32>
    %399 = vector.broadcast %225 : vector<1x32xf32> to vector<16x32xf32>
    %400 = arith.addf %398, %399 : vector<16x32xf32>
    %401 = vector.shape_cast %400 : vector<16x32xf32> to vector<2x8x32xf32>
    %402 = vector.extract_strided_slice %401 {offsets = [0, 0, 0], sizes = [2, 1, 32], strides = [1, 1, 1]} : vector<2x8x32xf32> to vector<2x1x32xf32>
    %403 = vector.shape_cast %402 : vector<2x1x32xf32> to vector<2x32xf32>
    %404 = arith.truncf %403 : vector<2x32xf32> to vector<2x32xbf16>
    %c0_147 = arith.constant 0 : index
    %c0_148 = arith.constant 0 : index
    %405 = vector.load %arg14[%c0_147, %c0_148] : memref<32x128xbf16, #tpu.memory_space<vmem>>, vector<32x128xbf16>
    %cst_149 = arith.constant dense<0.000000e+00> : vector<2x128xf32>
    %406 = tpu.matmul %404, %405, %cst_149 {dimension_numbers = #tpu.dot_dimension_numbers<[1], [0], [0], [1], [0, 0, 1, 1], [], []>} : vector<2x32xbf16>, vector<32x128xbf16>, vector<2x128xf32> -> vector<2x128xf32>
    %c0_150 = arith.constant 0 : index
    %c0_151 = arith.constant 0 : index
    %407 = vector.load %arg15[%c0_150, %c0_151] : memref<1x128xf32, #tpu.memory_space<vmem>>, vector<1x128xf32>
    %408 = vector.broadcast %407 : vector<1x128xf32> to vector<2x128xf32>
    %409 = arith.addf %406, %408 : vector<2x128xf32>
    %c0_152 = arith.constant 0 : index
    %c0_153 = arith.constant 0 : index
    %410 = vector.load %arg16[%c0_152, %c0_153] : memref<2x128xf32, #tpu.memory_space<vmem>>, vector<2x128xf32>
    tpu.vector_store %arg16[%c0_152, %c0_153], %409 {strides = array<i32>} : memref<2x128xf32, #tpu.memory_space<vmem>>, vector<2x128xf32>,
    return
  }
}

</mosaic_0001>

<llo_original>
// kernel: tpu_custom_call.1
$region0: #{tpu_custom_call.1}
  #allocation0 [shape = 'u32[]', space=smem, size = 0x4, offset = 0x4, fixed_abs, tag = 'smem constant byte address 0x4 - core index']
  #allocation1 [shape = 'u32[72,128]{1,0:T(1,128)}', space=vmem, size = 0x9000, scoped, tag = 'internal scratch']
  %s0 = inlined_call_operand.vmem [shape: f32[2,8,32], index: 0, kind: input, shape index: {}]
  %s1 = inlined_call_operand.vmem [shape: f32[2,1,8], index: 1, kind: input, shape index: {}]
  %s2 = inlined_call_operand.vmem [shape: bf16[2,32,96], index: 2, kind: input, shape index: {}]
  %s3 = inlined_call_operand.vmem [shape: f32[2,1,96], index: 3, kind: input, shape index: {}]
  %s4 = inlined_call_operand.vmem [shape: bf16[2,32,32], index: 4, kind: input, shape index: {}]
  %s5 = inlined_call_operand.vmem [shape: f32[2,1,32], index: 5, kind: input, shape index: {}]
  %s6 = inlined_call_operand.vmem [shape: f32[2,1,32], index: 6, kind: input, shape index: {}]
  %s7 = inlined_call_operand.vmem [shape: f32[2,1,32], index: 7, kind: input, shape index: {}]
  %s8 = inlined_call_operand.vmem [shape: bf16[2,32,128], index: 8, kind: input, shape index: {}]
  %s9 = inlined_call_operand.vmem [shape: f32[2,1,128], index: 9, kind: input, shape index: {}]
  %s10 = inlined_call_operand.vmem [shape: bf16[2,128,32], index: 10, kind: input, shape index: {}]
  %s11 = inlined_call_operand.vmem [shape: f32[2,1,32], index: 11, kind: input, shape index: {}]
  %s12 = inlined_call_operand.vmem [shape: f32[2,1,32], index: 12, kind: input, shape index: {}]
  %s13 = inlined_call_operand.vmem [shape: f32[2,1,32], index: 13, kind: input, shape index: {}]
  %s14 = inlined_call_operand.vmem [shape: bf16[32,128], index: 14, kind: input, shape index: {}]
  %s15 = inlined_call_operand.vmem [shape: f32[1,128], index: 15, kind: input, shape index: {}]
  %s16 = inlined_call_operand.hbm [shape: f32[2,128], index: 16, kind: output, shape index: {}]
  %s17 = sld [smem:[#allocation0]]
  $region74: #{tpu_custom_call.1} parent=0
    _
  %s19 = ssub.s32 1, %s17
  %s20 = scalar_select 0, %s19, %s17
  $region1: #{tpu_custom_call.1} parent=0
    #allocation2 [shape = 'u8[1024]{0}', space=vmem, size = 0x400, scoped, tag = 'output window, operand 0, single buffered']
    #allocation3 [shape = 's32[1]{0}', space=sflag, size = 0x4, scoped, tag = 'scoped memory for tpu_custom_call.1']
    %21 = vsyncpa [#allocation3], 0
    // Predicated region
    $region2: #{tpu_custom_call.1} parent=1 // pred_check
      _
    $region3: #{tpu_custom_call.1} parent=1 // pred_check_branch
      %23 = sbr.rel (0) target = $region5
    $region4: #{tpu_custom_call.1} parent=1 // pred_region
      _
    $region5: #{tpu_custom_call.1} parent=1 // pred_fallthru
      _
    // Predicated region
    $region6: #{tpu_custom_call.1} parent=1 // pred_check
      _
    $region7: #{tpu_custom_call.1} parent=1 // pred_check_branch
      %25 = sbr.rel (0) target = $region9
    $region8: #{tpu_custom_call.1} parent=1 // pred_region
      _
    $region9: #{tpu_custom_call.1} parent=1 // pred_fallthru
      _
    // Predicated region
    $region10: #{tpu_custom_call.1} parent=1 // pred_check
      _
    $region11: #{tpu_custom_call.1} parent=1 // pred_check_branch
      %27 = sbr.rel (0) target = $region13
    $region12: #{tpu_custom_call.1} parent=1 // pred_region
      _
    $region13: #{tpu_custom_call.1} parent=1 // pred_fallthru
      _
    // Predicated region
    $region14: #{tpu_custom_call.1} parent=1 // pred_check
      _
    $region15: #{tpu_custom_call.1} parent=1 // pred_check_branch
      %29 = sbr.rel (0) target = $region17
    $region16: #{tpu_custom_call.1} parent=1 // pred_region
      _
    $region17: #{tpu_custom_call.1} parent=1 // pred_fallthru
      _
    // Predicated region
    $region18: #{tpu_custom_call.1} parent=1 // pred_check
      _
    $region19: #{tpu_custom_call.1} parent=1 // pred_check_branch
      %31 = sbr.rel (0) target = $region21
    $region20: #{tpu_custom_call.1} parent=1 // pred_region
      _
    $region21: #{tpu_custom_call.1} parent=1 // pred_fallthru
      _
    // Predicated region
    $region22: #{tpu_custom_call.1} parent=1 // pred_check
      _
    $region23: #{tpu_custom_call.1} parent=1 // pred_check_branch
      %33 = sbr.rel (0) target = $region25
    $region24: #{tpu_custom_call.1} parent=1 // pred_region
      _
    $region25: #{tpu_custom_call.1} parent=1 // pred_fallthru
      _
    // Predicated region
    $region26: #{tpu_custom_call.1} parent=1 // pred_check
      _
    $region27: #{tpu_custom_call.1} parent=1 // pred_check_branch
      %35 = sbr.rel (0) target = $region29
    $region28: #{tpu_custom_call.1} parent=1 // pred_region
      _
    $region29: #{tpu_custom_call.1} parent=1 // pred_fallthru
      _
    // Predicated region
    $region30: #{tpu_custom_call.1} parent=1 // pred_check
      _
    $region31: #{tpu_custom_call.1} parent=1 // pred_check_branch
      %37 = sbr.rel (0) target = $region33
    $region32: #{tpu_custom_call.1} parent=1 // pred_region
      _
    $region33: #{tpu_custom_call.1} parent=1 // pred_fallthru
      _
    // Predicated region
    $region34: #{tpu_custom_call.1} parent=1 // pred_check
      _
    $region35: #{tpu_custom_call.1} parent=1 // pred_check_branch
      %39 = sbr.rel (0) target = $region37
    $region36: #{tpu_custom_call.1} parent=1 // pred_region
      _
    $region37: #{tpu_custom_call.1} parent=1 // pred_fallthru
      _
    // Predicated region
    $region38: #{tpu_custom_call.1} parent=1 // pred_check
      _
    $region39: #{tpu_custom_call.1} parent=1 // pred_check_branch
      %41 = sbr.rel (0) target = $region41
    $region40: #{tpu_custom_call.1} parent=1 // pred_region
      _
    $region41: #{tpu_custom_call.1} parent=1 // pred_fallthru
      _
    // Predicated region
    $region42: #{tpu_custom_call.1} parent=1 // pred_check
      _
    $region43: #{tpu_custom_call.1} parent=1 // pred_check_branch
      %43 = sbr.rel (0) target = $region45
    $region44: #{tpu_custom_call.1} parent=1 // pred_region
      _
    $region45: #{tpu_custom_call.1} parent=1 // pred_fallthru
      _
    // Predicated region
    $region46: #{tpu_custom_call.1} parent=1 // pred_check
      _
    $region47: #{tpu_custom_call.1} parent=1 // pred_check_branch
      %45 = sbr.rel (0) target = $region49
    $region48: #{tpu_custom_call.1} parent=1 // pred_region
      _
    $region49: #{tpu_custom_call.1} parent=1 // pred_fallthru
      _
    // Predicated region
    $region50: #{tpu_custom_call.1} parent=1 // pred_check
      _
    $region51: #{tpu_custom_call.1} parent=1 // pred_check_branch
      %47 = sbr.rel (0) target = $region53
    $region52: #{tpu_custom_call.1} parent=1 // pred_region
      _
    $region53: #{tpu_custom_call.1} parent=1 // pred_fallthru
      _
    // Predicated region
    $region54: #{tpu_custom_call.1} parent=1 // pred_check
      _
    $region55: #{tpu_custom_call.1} parent=1 // pred_check_branch
      %49 = sbr.rel (0) target = $region57
    $region56: #{tpu_custom_call.1} parent=1 // pred_region
      _
    $region57: #{tpu_custom_call.1} parent=1 // pred_fallthru
      _
    // Predicated region
    $region58: #{tpu_custom_call.1} parent=1 // pred_check
      _
    $region59: #{tpu_custom_call.1} parent=1 // pred_check_branch
      %51 = sbr.rel (0) target = $region61
    $region60: #{tpu_custom_call.1} parent=1 // pred_region
      _
    $region61: #{tpu_custom_call.1} parent=1 // pred_fallthru
      _
    // Predicated region
    $region62: #{tpu_custom_call.1} parent=1 // pred_check
      _
    $region63: #{tpu_custom_call.1} parent=1 // pred_check_branch
      %53 = sbr.rel (0) target = $region65
    $region64: #{tpu_custom_call.1} parent=1 // pred_region
      _
    $region65: #{tpu_custom_call.1} parent=1 // pred_fallthru
      _
    %v55 = vld [vmem:[%s0] sm:$0xff]
    %v56 = vld [vmem:[%s0 + $0x8] sm:$0xff]
    %v57 = vld [vmem:[%s1] sm:$0x1]
    %v58 = vld [vmem:[%s1 + $0x1] sm:$0x1]
    %v59 = vld [vmem:[%s2] sm:$0xf]
    %v60 = vld [vmem:[%s2 + $0x4] sm:$0xf]
    %v61 = vld [vmem:[%s2 + $0x8] sm:$0xf]
    %v62 = vld [vmem:[%s2 + $0xc] sm:$0xf]
    %v63 = vld [vmem:[%s4] sm:$0xf]
    %v64 = vld [vmem:[%s4 + $0x4] sm:$0xf]
    %v65 = vld [vmem:[%s4 + $0x8] sm:$0xf]
    %v66 = vld [vmem:[%s4 + $0xc] sm:$0xf]
    %v67 = vld [vmem:[%s8] sm:$0xf]
    %v68 = vld [vmem:[%s8 + $0x4] sm:$0xf]
    %v69 = vld [vmem:[%s8 + $0x8] sm:$0xf]
    %v70 = vld [vmem:[%s8 + $0xc] sm:$0xf]
    %v71 = vld [vmem:[%s10] sm:$0xf]
    %v72 = vld [vmem:[%s10 + $0x4] sm:$0xf]
    %v73 = vld [vmem:[%s10 + $0x8] sm:$0xf]
    %v74 = vld [vmem:[%s10 + $0xc] sm:$0xf]
    %v75 = vld [vmem:[%s10 + $0x10] sm:$0xf]
    %v76 = vld [vmem:[%s10 + $0x14] sm:$0xf]
    %v77 = vld [vmem:[%s10 + $0x18] sm:$0xf]
    %v78 = vld [vmem:[%s10 + $0x1c] sm:$0xf]
    %v79 = vld [vmem:[%s10 + $0x20] sm:$0xf]
    %v80 = vld [vmem:[%s10 + $0x24] sm:$0xf]
    %v81 = vld [vmem:[%s10 + $0x28] sm:$0xf]
    %v82 = vld [vmem:[%s10 + $0x2c] sm:$0xf]
    %v83 = vld [vmem:[%s10 + $0x30] sm:$0xf]
    %v84 = vld [vmem:[%s10 + $0x34] sm:$0xf]
    %v85 = vld [vmem:[%s10 + $0x38] sm:$0xf]
    %v86 = vld [vmem:[%s10 + $0x3c] sm:$0xf]
    %v87 = vld [vmem:[%s3] sm:$0x1]
    %v88 = vld [vmem:[%s5] sm:$0x1]
    %v89 = vld [vmem:[%s6] sm:$0x1]
    %v90 = vld [vmem:[%s7] sm:$0x1]
    %v91 = vld [vmem:[%s9] sm:$0x1]
    %v92 = vld [vmem:[%s11] sm:$0x1]
    %v93 = vld [vmem:[%s12] sm:$0x1]
    %v94 = vld [vmem:[%s13] sm:$0x1]
    %v95 = vpack.c.bf16 %v56, %v55
    %v97 = vperm.slane %v87, 0
    %v103 = vunpack.c.l.b16 %v59
    %v104 = vunpack.c.l.b16 %v60
    %v105 = vunpack.c.l.b16 %v61
    %v106 = vunpack.c.l.b16 %v62
    %v107 = vpack.c.b16 %v104, %v103
    %v108 = vpack.c.b16 %v106, %v105
    %vm111 = vcmask 261120
    %v113 = vsel %vm111, %v95, 0
    %115 = vmatpush.bf16.msra.mxu0 0
    %116 = vmatpush.bf16.msra.mxu0 0
    %117 = vmatpush.bf16.msra.mxu0 0
    %118 = vmatpush.bf16.msra.mxu0 0
    %119 = vmatpush.bf16.msra.mxu0 0
    %120 = vmatpush.bf16.msra.mxu0 0
    %121 = vmatpush.bf16.msra.mxu0 %v108
    %122 = vmatpush.bf16.msra.mxu0 %v107
    %123 = vmatmul.bf16.gmra.mxu0 %v113
    %v124 = vpop.f32.mrf.mxu0
    %v125 = vadd.f32 %v97, %v124
    %v126 = vpop.f32.mrf.mxu0
    %v127 = vadd.f32 %v97, %v126
    %128 = vdwg.mxu0
    %v129 = vmul.f32 %v125, 0.35355338
    %v130 = vmul.f32 %v127, 0.35355338
    %v131 = vpack.c.bf16 %v129, %v129
    %v132 = vpack.c.bf16 %v130, %v130
    %v133 = vpack.c.bf16 %v125, %v125
    %v134 = vpack.c.bf16 %v127, %v127
    %v137 = vperm.slane %v57, 0
    %v138 = vperm.slane %v58, 0
    %v142 = vunpack.c.l.b16 %v133
    %v143 = vpack.c.b16 %v142, %v142
    %144 = vrot.lane.b32.xlu0 %v143, 96
    %v145 = vpop.permute.xlu0 %144
    %vm146 = vcmask 64512
    %v148 = vsel %vm146, %v131, 0
    %v151 = vsel %vm146, %v145, 0
    %153 = vmatpush.bf16.xpose.msra.mxu0 0
    %154 = vmatpush.bf16.xpose.msra.mxu0 0
    %155 = vmatpush.bf16.xpose.msra.mxu0 0
    %156 = vmatpush.bf16.xpose.msra.mxu0 0
    %157 = vmatpush.bf16.xpose.msra.mxu0 0
    %158 = vmatpush.bf16.xpose.msra.mxu0 0
    %159 = vmatpush.bf16.xpose.msra.mxu0 0
    %160 = vmatpush.bf16.xpose.msra.mxu0 %v151
    %161 = vmatmul.bf16.gmra.mxu0 %v148
    %v162 = vpop.f32.mrf.mxu0
    %v163 = vadd.f32 %v137, %v162
    %v164 = vpop.f32.mrf.mxu0
    %165 = vdwg.mxu0
    %v167 = vunpack.c.l.b16 %v134
    %v168 = vpack.c.b16 %v167, %v167
    %169 = vrot.lane.b32.xlu0 %v168, 96
    %v170 = vpop.permute.xlu0 %169
    %v172 = vsel %vm146, %v132, 0
    %v175 = vsel %vm146, %v170, 0
    %177 = vmatpush.bf16.xpose.msra.mxu0 0
    %178 = vmatpush.bf16.xpose.msra.mxu0 0
    %179 = vmatpush.bf16.xpose.msra.mxu0 0
    %180 = vmatpush.bf16.xpose.msra.mxu0 0
    %181 = vmatpush.bf16.xpose.msra.mxu0 0
    %182 = vmatpush.bf16.xpose.msra.mxu0 0
    %183 = vmatpush.bf16.xpose.msra.mxu0 0
    %184 = vmatpush.bf16.xpose.msra.mxu0 %v175
    %185 = vmatmul.bf16.gmra.mxu0 %v172
    %v186 = vpop.f32.mrf.mxu0
    %v187 = vadd.f32 %v138, %v186
    %v188 = vpop.f32.mrf.mxu0
    %189 = vdwg.mxu0
    %v190 = vsel %vm146, %v163, -inf
    %191 = vmax.xlane.f32.xlu0 %v190
    %v192 = vpop.xlane.xlu0 %191
    %v193 = vsel %vm146, %v187, -inf
    %194 = vmax.xlane.f32.xlu0 %v193
    %v195 = vpop.xlane.xlu0 %194
    %v196 = vsub.f32 %v163, %v192
    %v197 = vsub.f32 %v187, %v195
    %v198 = vmul.f32 %v196, 1.442695
    %v199 = vpow.pop %v198
    %v200 = vmul.f32 %v197, 1.442695
    %v201 = vpow.pop %v200
    %v202 = vsel %vm146, %v199, 0.0
    %203 = vadd.xlane.f32.xlu0 %v202
    %v204 = vpop.xlane.xlu0 %203
    %v205 = vsel %vm146, %v201, 0.0
    %206 = vadd.xlane.f32.xlu0 %v205
    %v207 = vpop.xlane.xlu0 %206
    %v208 = vrcp.pop %v204
    %v209 = vrcp.pop %v207
    %v210 = vmul.f32 %v199, %v208
    %v211 = vmul.f32 %v201, %v209
    %v212 = vpack.c.bf16 %v210, %v210
    %v213 = vpack.c.bf16 %v211, %v211
    %214 = vrot.lane.b32.xlu0 %v143, 64
    %v215 = vpop.permute.xlu0 %214
    %v217 = vsel %vm146, %v212, 0
    %vm219 = vcmask 1043456
    %v221 = vsel %vm219, %v215, 0
    %223 = vmatpush.bf16.msra.mxu0 0
    %224 = vmatpush.bf16.msra.mxu0 0
    %225 = vmatpush.bf16.msra.mxu0 0
    %226 = vmatpush.bf16.msra.mxu0 0
    %227 = vmatpush.bf16.msra.mxu0 0
    %228 = vmatpush.bf16.msra.mxu0 0
    %229 = vmatpush.bf16.msra.mxu0 0
    %230 = vmatpush.bf16.msra.mxu0 %v221
    %231 = vmatmul.bf16.gmra.mxu0 %v217
    %v232 = vpop.f32.mrf.mxu0
    %v233 = vadd.f32 0.0, %v232
    %v234 = vpop.f32.mrf.mxu0
    %235 = vdwg.mxu0
    %236 = vrot.lane.b32.xlu0 %v168, 64
    %v237 = vpop.permute.xlu0 %236
    %v239 = vsel %vm146, %v213, 0
    %v242 = vsel %vm219, %v237, 0
    %244 = vmatpush.bf16.msra.mxu0 0
    %245 = vmatpush.bf16.msra.mxu0 0
    %246 = vmatpush.bf16.msra.mxu0 0
    %247 = vmatpush.bf16.msra.mxu0 0
    %248 = vmatpush.bf16.msra.mxu0 0
    %249 = vmatpush.bf16.msra.mxu0 0
    %250 = vmatpush.bf16.msra.mxu0 0
    %251 = vmatpush.bf16.msra.mxu0 %v242
    %252 = vmatmul.bf16.gmra.mxu0 %v239
    %v253 = vpop.f32.mrf.mxu0
    %v254 = vadd.f32 0.0, %v253
    %v255 = vpop.f32.mrf.mxu0
    %256 = vdwg.mxu0
    %v257 = vpack.c.bf16 %v254, %v233
    %v259 = vunpack.c.l.b16 %v131
    %v260 = vpack.c.b16 %v259, %v259
    %261 = vrot.lane.b32.xlu0 %v260, 120
    %v262 = vpop.permute.xlu0 %261
    %263 = vrot.lane.b32.xlu0 %v143, 88
    %v264 = vpop.permute.xlu0 %263
    %v266 = vsel %vm146, %v262, 0
    %v269 = vsel %vm146, %v264, 0
    %271 = vmatpush.bf16.xpose.msra.mxu0 0
    %272 = vmatpush.bf16.xpose.msra.mxu0 0
    %273 = vmatpush.bf16.xpose.msra.mxu0 0
    %274 = vmatpush.bf16.xpose.msra.mxu0 0
    %275 = vmatpush.bf16.xpose.msra.mxu0 0
    %276 = vmatpush.bf16.xpose.msra.mxu0 0
    %277 = vmatpush.bf16.xpose.msra.mxu0 0
    %278 = vmatpush.bf16.xpose.msra.mxu0 %v269
    %279 = vmatmul.bf16.gmra.mxu0 %v266
    %v280 = vpop.f32.mrf.mxu0
    %v281 = vadd.f32 %v137, %v280
    %v282 = vpop.f32.mrf.mxu0
    %283 = vdwg.mxu0
    %v285 = vunpack.c.l.b16 %v132
    %v286 = vpack.c.b16 %v285, %v285
    %287 = vrot.lane.b32.xlu0 %v286, 120
    %v288 = vpop.permute.xlu0 %287
    %289 = vrot.lane.b32.xlu0 %v168, 88
    %v290 = vpop.permute.xlu0 %289
    %v292 = vsel %vm146, %v288, 0
    %v295 = vsel %vm146, %v290, 0
    %297 = vmatpush.bf16.xpose.msra.mxu0 0
    %298 = vmatpush.bf16.xpose.msra.mxu0 0
    %299 = vmatpush.bf16.xpose.msra.mxu0 0
    %300 = vmatpush.bf16.xpose.msra.mxu0 0
    %301 = vmatpush.bf16.xpose.msra.mxu0 0
    %302 = vmatpush.bf16.xpose.msra.mxu0 0
    %303 = vmatpush.bf16.xpose.msra.mxu0 0
    %304 = vmatpush.bf16.xpose.msra.mxu0 %v295
    %305 = vmatmul.bf16.gmra.mxu0 %v292
    %v306 = vpop.f32.mrf.mxu0
    %v307 = vadd.f32 %v138, %v306
    %v308 = vpop.f32.mrf.mxu0
    %309 = vdwg.mxu0
    %v310 = vsel %vm146, %v281, -inf
    %311 = vmax.xlane.f32.xlu0 %v310
    %v312 = vpop.xlane.xlu0 %311
    %v313 = vsel %vm146, %v307, -inf
    %314 = vmax.xlane.f32.xlu0 %v313
    %v315 = vpop.xlane.xlu0 %314
    %v316 = vsub.f32 %v281, %v312
    %v317 = vsub.f32 %v307, %v315
    %v318 = vmul.f32 %v316, 1.442695
    %v319 = vpow.pop %v318
    %v320 = vmul.f32 %v317, 1.442695
    %v321 = vpow.pop %v320
    %v322 = vsel %vm146, %v319, 0.0
    %323 = vadd.xlane.f32.xlu0 %v322
    %v324 = vpop.xlane.xlu0 %323
    %v325 = vsel %vm146, %v321, 0.0
    %326 = vadd.xlane.f32.xlu0 %v325
    %v327 = vpop.xlane.xlu0 %326
    %v328 = vrcp.pop %v324
    %v329 = vrcp.pop %v327
    %v330 = vmul.f32 %v319, %v328
    %v331 = vmul.f32 %v321, %v329
    %v332 = vpack.c.bf16 %v330, %v330
    %v333 = vpack.c.bf16 %v331, %v331
    %334 = vrot.lane.b32.xlu0 %v143, 56
    %v335 = vpop.permute.xlu0 %334
    %v337 = vsel %vm146, %v332, 0
    %v340 = vsel %vm219, %v335, 0
    %342 = vmatpush.bf16.msra.mxu0 0
    %343 = vmatpush.bf16.msra.mxu0 0
    %344 = vmatpush.bf16.msra.mxu0 0
    %345 = vmatpush.bf16.msra.mxu0 0
    %346 = vmatpush.bf16.msra.mxu0 0
    %347 = vmatpush.bf16.msra.mxu0 0
    %348 = vmatpush.bf16.msra.mxu0 0
    %349 = vmatpush.bf16.msra.mxu0 %v340
    %350 = vmatmul.bf16.gmra.mxu0 %v337
    %v351 = vpop.f32.mrf.mxu0
    %v352 = vadd.f32 0.0, %v351
    %v353 = vpop.f32.mrf.mxu0
    %354 = vdwg.mxu0
    %355 = vrot.lane.b32.xlu0 %v168, 56
    %v356 = vpop.permute.xlu0 %355
    %v358 = vsel %vm146, %v333, 0
    %v361 = vsel %vm219, %v356, 0
    %363 = vmatpush.bf16.msra.mxu0 0
    %364 = vmatpush.bf16.msra.mxu0 0
    %365 = vmatpush.bf16.msra.mxu0 0
    %366 = vmatpush.bf16.msra.mxu0 0
    %367 = vmatpush.bf16.msra.mxu0 0
    %368 = vmatpush.bf16.msra.mxu0 0
    %369 = vmatpush.bf16.msra.mxu0 0
    %370 = vmatpush.bf16.msra.mxu0 %v361
    %371 = vmatmul.bf16.gmra.mxu0 %v358
    %v372 = vpop.f32.mrf.mxu0
    %v373 = vadd.f32 0.0, %v372
    %v374 = vpop.f32.mrf.mxu0
    %375 = vdwg.mxu0
    %v376 = vpack.c.bf16 %v373, %v352
    %v378 = vsel %vm146, %v376, 0
    %v381 = vsel %vm219, %v64, 0
    %383 = vmatpush.bf16.msra.mxu0 0
    %384 = vmatpush.bf16.msra.mxu0 0
    %385 = vmatpush.bf16.msra.mxu0 0
    %386 = vmatpush.bf16.msra.mxu0 0
    %387 = vmatpush.bf16.msra.mxu0 0
    %388 = vmatpush.bf16.msra.mxu0 0
    %389 = vmatpush.bf16.msra.mxu0 0
    %390 = vmatpush.bf16.msra.mxu0 %v381
    %391 = vmatmul.bf16.gmra.mxu0 %v378
    %v392 = vpop.f32.mrf.mxu0
    %v393 = vadd.f32 0.0, %v392
    %v394 = vpop.f32.mrf.mxu0
    %v395 = vadd.f32 0.0, %v394
    %396 = vdwg.mxu0
    %v398 = vsel %vm146, %v257, 0
    %v401 = vsel %vm219, %v63, 0
    %403 = vmatpush.bf16.msra.mxu0 0
    %404 = vmatpush.bf16.msra.mxu0 0
    %405 = vmatpush.bf16.msra.mxu0 0
    %406 = vmatpush.bf16.msra.mxu0 0
    %407 = vmatpush.bf16.msra.mxu0 0
    %408 = vmatpush.bf16.msra.mxu0 0
    %409 = vmatpush.bf16.msra.mxu0 0
    %410 = vmatpush.bf16.msra.mxu0 %v401
    %411 = vmatmul.bf16.gmra.mxu0 %v398
    %v412 = vpop.f32.mrf.mxu0
    %v413 = vadd.f32 %v393, %v412
    %v414 = vpop.f32.mrf.mxu0
    %v415 = vadd.f32 %v395, %v414
    %416 = vdwg.mxu0
    %417 = vrot.lane.b32.xlu0 %v260, 112
    %v418 = vpop.permute.xlu0 %417
    %419 = vrot.lane.b32.xlu0 %v143, 80
    %v420 = vpop.permute.xlu0 %419
    %v422 = vsel %vm146, %v418, 0
    %v425 = vsel %vm146, %v420, 0
    %427 = vmatpush.bf16.xpose.msra.mxu0 0
    %428 = vmatpush.bf16.xpose.msra.mxu0 0
    %429 = vmatpush.bf16.xpose.msra.mxu0 0
    %430 = vmatpush.bf16.xpose.msra.mxu0 0
    %431 = vmatpush.bf16.xpose.msra.mxu0 0
    %432 = vmatpush.bf16.xpose.msra.mxu0 0
    %433 = vmatpush.bf16.xpose.msra.mxu0 0
    %434 = vmatpush.bf16.xpose.msra.mxu0 %v425
    %435 = vmatmul.bf16.gmra.mxu0 %v422
    %v436 = vpop.f32.mrf.mxu0
    %v437 = vadd.f32 %v137, %v436
    %v438 = vpop.f32.mrf.mxu0
    %439 = vdwg.mxu0
    %440 = vrot.lane.b32.xlu0 %v286, 112
    %v441 = vpop.permute.xlu0 %440
    %442 = vrot.lane.b32.xlu0 %v168, 80
    %v443 = vpop.permute.xlu0 %442
    %v445 = vsel %vm146, %v441, 0
    %v448 = vsel %vm146, %v443, 0
    %450 = vmatpush.bf16.xpose.msra.mxu0 0
    %451 = vmatpush.bf16.xpose.msra.mxu0 0
    %452 = vmatpush.bf16.xpose.msra.mxu0 0
    %453 = vmatpush.bf16.xpose.msra.mxu0 0
    %454 = vmatpush.bf16.xpose.msra.mxu0 0
    %455 = vmatpush.bf16.xpose.msra.mxu0 0
    %456 = vmatpush.bf16.xpose.msra.mxu0 0
    %457 = vmatpush.bf16.xpose.msra.mxu0 %v448
    %458 = vmatmul.bf16.gmra.mxu0 %v445
    %v459 = vpop.f32.mrf.mxu0
    %v460 = vadd.f32 %v138, %v459
    %v461 = vpop.f32.mrf.mxu0
    %462 = vdwg.mxu0
    %v463 = vsel %vm146, %v437, -inf
    %464 = vmax.xlane.f32.xlu0 %v463
    %v465 = vpop.xlane.xlu0 %464
    %v466 = vsel %vm146, %v460, -inf
    %467 = vmax.xlane.f32.xlu0 %v466
    %v468 = vpop.xlane.xlu0 %467
    %v469 = vsub.f32 %v437, %v465
    %v470 = vsub.f32 %v460, %v468
    %v471 = vmul.f32 %v469, 1.442695
    %v472 = vpow.pop %v471
    %v473 = vmul.f32 %v470, 1.442695
    %v474 = vpow.pop %v473
    %v475 = vsel %vm146, %v472, 0.0
    %476 = vadd.xlane.f32.xlu0 %v475
    %v477 = vpop.xlane.xlu0 %476
    %v478 = vsel %vm146, %v474, 0.0
    %479 = vadd.xlane.f32.xlu0 %v478
    %v480 = vpop.xlane.xlu0 %479
    %v481 = vrcp.pop %v477
    %v482 = vrcp.pop %v480
    %v483 = vmul.f32 %v472, %v481
    %v484 = vmul.f32 %v474, %v482
    %v485 = vpack.c.bf16 %v483, %v483
    %v486 = vpack.c.bf16 %v484, %v484
    %487 = vrot.lane.b32.xlu0 %v143, 48
    %v488 = vpop.permute.xlu0 %487
    %v490 = vsel %vm146, %v485, 0
    %v493 = vsel %vm219, %v488, 0
    %495 = vmatpush.bf16.msra.mxu0 0
    %496 = vmatpush.bf16.msra.mxu0 0
    %497 = vmatpush.bf16.msra.mxu0 0
    %498 = vmatpush.bf16.msra.mxu0 0
    %499 = vmatpush.bf16.msra.mxu0 0
    %500 = vmatpush.bf16.msra.mxu0 0
    %501 = vmatpush.bf16.msra.mxu0 0
    %502 = vmatpush.bf16.msra.mxu0 %v493
    %503 = vmatmul.bf16.gmra.mxu0 %v490
    %v504 = vpop.f32.mrf.mxu0
    %v505 = vadd.f32 0.0, %v504
    %v506 = vpop.f32.mrf.mxu0
    %507 = vdwg.mxu0
    %508 = vrot.lane.b32.xlu0 %v168, 48
    %v509 = vpop.permute.xlu0 %508
    %v511 = vsel %vm146, %v486, 0
    %v514 = vsel %vm219, %v509, 0
    %516 = vmatpush.bf16.msra.mxu0 0
    %517 = vmatpush.bf16.msra.mxu0 0
    %518 = vmatpush.bf16.msra.mxu0 0
    %519 = vmatpush.bf16.msra.mxu0 0
    %520 = vmatpush.bf16.msra.mxu0 0
    %521 = vmatpush.bf16.msra.mxu0 0
    %522 = vmatpush.bf16.msra.mxu0 0
    %523 = vmatpush.bf16.msra.mxu0 %v514
    %524 = vmatmul.bf16.gmra.mxu0 %v511
    %v525 = vpop.f32.mrf.mxu0
    %v526 = vadd.f32 0.0, %v525
    %v527 = vpop.f32.mrf.mxu0
    %528 = vdwg.mxu0
    %v529 = vpack.c.bf16 %v526, %v505
    %v531 = vsel %vm146, %v529, 0
    %v534 = vsel %vm219, %v65, 0
    %536 = vmatpush.bf16.msra.mxu0 0
    %537 = vmatpush.bf16.msra.mxu0 0
    %538 = vmatpush.bf16.msra.mxu0 0
    %539 = vmatpush.bf16.msra.mxu0 0
    %540 = vmatpush.bf16.msra.mxu0 0
    %541 = vmatpush.bf16.msra.mxu0 0
    %542 = vmatpush.bf16.msra.mxu0 0
    %543 = vmatpush.bf16.msra.mxu0 %v534
    %544 = vmatmul.bf16.gmra.mxu0 %v531
    %v545 = vpop.f32.mrf.mxu0
    %v546 = vadd.f32 0.0, %v545
    %v547 = vpop.f32.mrf.mxu0
    %v548 = vadd.f32 0.0, %v547
    %549 = vdwg.mxu0
    %v550 = vadd.f32 %v413, %v546
    %v551 = vadd.f32 %v415, %v548
    %552 = vrot.lane.b32.xlu0 %v260, 104
    %v553 = vpop.permute.xlu0 %552
    %554 = vrot.lane.b32.xlu0 %v143, 72
    %v555 = vpop.permute.xlu0 %554
    %v557 = vsel %vm146, %v553, 0
    %v560 = vsel %vm146, %v555, 0
    %562 = vmatpush.bf16.xpose.msra.mxu0 0
    %563 = vmatpush.bf16.xpose.msra.mxu0 0
    %564 = vmatpush.bf16.xpose.msra.mxu0 0
    %565 = vmatpush.bf16.xpose.msra.mxu0 0
    %566 = vmatpush.bf16.xpose.msra.mxu0 0
    %567 = vmatpush.bf16.xpose.msra.mxu0 0
    %568 = vmatpush.bf16.xpose.msra.mxu0 0
    %569 = vmatpush.bf16.xpose.msra.mxu0 %v560
    %570 = vmatmul.bf16.gmra.mxu0 %v557
    %v571 = vpop.f32.mrf.mxu0
    %v572 = vadd.f32 %v137, %v571
    %v573 = vpop.f32.mrf.mxu0
    %574 = vdwg.mxu0
    %575 = vrot.lane.b32.xlu0 %v286, 104
    %v576 = vpop.permute.xlu0 %575
    %577 = vrot.lane.b32.xlu0 %v168, 72
    %v578 = vpop.permute.xlu0 %577
    %v580 = vsel %vm146, %v576, 0
    %v583 = vsel %vm146, %v578, 0
    %585 = vmatpush.bf16.xpose.msra.mxu0 0
    %586 = vmatpush.bf16.xpose.msra.mxu0 0
    %587 = vmatpush.bf16.xpose.msra.mxu0 0
    %588 = vmatpush.bf16.xpose.msra.mxu0 0
    %589 = vmatpush.bf16.xpose.msra.mxu0 0
    %590 = vmatpush.bf16.xpose.msra.mxu0 0
    %591 = vmatpush.bf16.xpose.msra.mxu0 0
    %592 = vmatpush.bf16.xpose.msra.mxu0 %v583
    %593 = vmatmul.bf16.gmra.mxu0 %v580
    %v594 = vpop.f32.mrf.mxu0
    %v595 = vadd.f32 %v138, %v594
    %v596 = vpop.f32.mrf.mxu0
    %597 = vdwg.mxu0
    %v598 = vsel %vm146, %v572, -inf
    %599 = vmax.xlane.f32.xlu0 %v598
    %v600 = vpop.xlane.xlu0 %599
    %v601 = vsel %vm146, %v595, -inf
    %602 = vmax.xlane.f32.xlu0 %v601
    %v603 = vpop.xlane.xlu0 %602
    %v604 = vsub.f32 %v572, %v600
    %v605 = vsub.f32 %v595, %v603
    %v606 = vmul.f32 %v604, 1.442695
    %v607 = vpow.pop %v606
    %v608 = vmul.f32 %v605, 1.442695
    %v609 = vpow.pop %v608
    %v610 = vsel %vm146, %v607, 0.0
    %611 = vadd.xlane.f32.xlu0 %v610
    %v612 = vpop.xlane.xlu0 %611
    %v613 = vsel %vm146, %v609, 0.0
    %614 = vadd.xlane.f32.xlu0 %v613
    %v615 = vpop.xlane.xlu0 %614
    %v616 = vrcp.pop %v612
    %v617 = vrcp.pop %v615
    %v618 = vmul.f32 %v607, %v616
    %v619 = vmul.f32 %v609, %v617
    %v620 = vpack.c.bf16 %v618, %v618
    %v621 = vpack.c.bf16 %v619, %v619
    %622 = vrot.lane.b32.xlu0 %v143, 40
    %v623 = vpop.permute.xlu0 %622
    %v625 = vsel %vm146, %v620, 0
    %v628 = vsel %vm219, %v623, 0
    %630 = vmatpush.bf16.msra.mxu0 0
    %631 = vmatpush.bf16.msra.mxu0 0
    %632 = vmatpush.bf16.msra.mxu0 0
    %633 = vmatpush.bf16.msra.mxu0 0
    %634 = vmatpush.bf16.msra.mxu0 0
    %635 = vmatpush.bf16.msra.mxu0 0
    %636 = vmatpush.bf16.msra.mxu0 0
    %637 = vmatpush.bf16.msra.mxu0 %v628
    %638 = vmatmul.bf16.gmra.mxu0 %v625
    %v639 = vpop.f32.mrf.mxu0
    %v640 = vadd.f32 0.0, %v639
    %v641 = vpop.f32.mrf.mxu0
    %642 = vdwg.mxu0
    %643 = vrot.lane.b32.xlu0 %v168, 40
    %v644 = vpop.permute.xlu0 %643
    %v646 = vsel %vm146, %v621, 0
    %v649 = vsel %vm219, %v644, 0
    %651 = vmatpush.bf16.msra.mxu0 0
    %652 = vmatpush.bf16.msra.mxu0 0
    %653 = vmatpush.bf16.msra.mxu0 0
    %654 = vmatpush.bf16.msra.mxu0 0
    %655 = vmatpush.bf16.msra.mxu0 0
    %656 = vmatpush.bf16.msra.mxu0 0
    %657 = vmatpush.bf16.msra.mxu0 0
    %658 = vmatpush.bf16.msra.mxu0 %v649
    %659 = vmatmul.bf16.gmra.mxu0 %v646
    %v660 = vpop.f32.mrf.mxu0
    %v661 = vadd.f32 0.0, %v660
    %v662 = vpop.f32.mrf.mxu0
    %663 = vdwg.mxu0
    %v664 = vpack.c.bf16 %v661, %v640
    %v666 = vsel %vm146, %v664, 0
    %v669 = vsel %vm219, %v66, 0
    %671 = vmatpush.bf16.msra.mxu0 0
    %672 = vmatpush.bf16.msra.mxu0 0
    %673 = vmatpush.bf16.msra.mxu0 0
    %674 = vmatpush.bf16.msra.mxu0 0
    %675 = vmatpush.bf16.msra.mxu0 0
    %676 = vmatpush.bf16.msra.mxu0 0
    %677 = vmatpush.bf16.msra.mxu0 0
    %678 = vmatpush.bf16.msra.mxu0 %v669
    %679 = vmatmul.bf16.gmra.mxu0 %v666
    %v680 = vpop.f32.mrf.mxu0
    %v681 = vadd.f32 0.0, %v680
    %v682 = vpop.f32.mrf.mxu0
    %v683 = vadd.f32 0.0, %v682
    %684 = vdwg.mxu0
    %v685 = vadd.f32 %v550, %v681
    %v686 = vadd.f32 %v551, %v683
    %v688 = vperm.slane %v88, 0
    %v690 = vadd.f32 %v685, %v688
    %v691 = vadd.f32 %v686, %v688
    %v692 = vadd.f32 %v55, %v690
    %v693 = vadd.f32 %v56, %v691
    %v694 = vsel %vm111, %v692, 0.0
    %695 = vadd.xlane.f32.xlu0 %v694
    %v696 = vpop.xlane.xlu0 %695
    %v697 = vsel %vm111, %v693, 0.0
    %698 = vadd.xlane.f32.xlu0 %v697
    %v699 = vpop.xlane.xlu0 %698
    %v700 = vrcp.pop 32.0
    %v701 = vmul.f32 32.0, %v700
    %v702 = vsub.f32 1.0, %v701
    %v703 = vmul.f32 %v700, %v702
    %v704 = vadd.f32 %v700, %v703
    %vm705 = vweird.f32 %v700
    %v706 = vsel %vm705, %v700, %v704
    %v707 = vmul.f32 %v696, %v706
    %v708 = vmul.f32 %v699, %v706
    %v709 = vsub.f32 %v692, %v707
    %v710 = vsub.f32 %v693, %v708
    %v711 = vmul.f32 %v709, %v709
    %v712 = vmul.f32 %v710, %v710
    %v713 = vsel %vm111, %v711, 0.0
    %714 = vadd.xlane.f32.xlu0 %v713
    %v715 = vpop.xlane.xlu0 %714
    %v716 = vsel %vm111, %v712, 0.0
    %717 = vadd.xlane.f32.xlu0 %v716
    %v718 = vpop.xlane.xlu0 %717
    %v719 = vmul.f32 %v715, %v706
    %v720 = vmul.f32 %v718, %v706
    %v721 = vadd.f32 %v719, 1e-05
    %v722 = vadd.f32 %v720, 1e-05
    %v723 = vrsqrt.pop %v721
    %v724 = vmul.f32 %v723, %v721
    %v725 = vmul.f32 %v724, %v723
    %v726 = vmul.f32 0.5, %v725
    %v727 = vsub.f32 1.5, %v726
    %v728 = vmul.f32 %v723, %v727
    %vm729 = vweird.f32 %v721
    %vm730 = vweird.f32 %v723
    %vm731 = vmor %vm729, %vm730
    %v732 = vsel %vm731, %v723, %v728
    %v733 = vrsqrt.pop %v722
    %v734 = vmul.f32 %v733, %v722
    %v735 = vmul.f32 %v734, %v733
    %v736 = vmul.f32 0.5, %v735
    %v737 = vsub.f32 1.5, %v736
    %v738 = vmul.f32 %v733, %v737
    %vm739 = vweird.f32 %v722
    %vm740 = vweird.f32 %v733
    %vm741 = vmor %vm739, %vm740
    %v742 = vsel %vm741, %v733, %v738
    %v743 = vmul.f32 %v709, %v732
    %v744 = vmul.f32 %v710, %v742
    %v746 = vperm.slane %v89, 0
    %v748 = vmul.f32 %v743, %v746
    %v749 = vmul.f32 %v744, %v746
    %v751 = vperm.slane %v90, 0
    %v753 = vadd.f32 %v748, %v751
    %v754 = vadd.f32 %v749, %v751
    %v755 = vpack.c.bf16 %v754, %v753
    %v757 = vperm.slane %v91, 0
    %v763 = vunpack.c.l.b16 %v67
    %v764 = vunpack.c.l.b16 %v68
    %v765 = vunpack.c.l.b16 %v69
    %v766 = vunpack.c.l.b16 %v70
    %v767 = vpack.c.b16 %v764, %v763
    %v768 = vpack.c.b16 %v766, %v765
    %v772 = vsel %vm111, %v755, 0
    %774 = vmatpush.bf16.msra.mxu0 0
    %775 = vmatpush.bf16.msra.mxu0 0
    %776 = vmatpush.bf16.msra.mxu0 0
    %777 = vmatpush.bf16.msra.mxu0 0
    %778 = vmatpush.bf16.msra.mxu0 0
    %779 = vmatpush.bf16.msra.mxu0 0
    %780 = vmatpush.bf16.msra.mxu0 %v768
    %781 = vmatpush.bf16.msra.mxu0 %v767
    %782 = vmatmul.bf16.gmra.mxu0 %v772
    %v783 = vpop.f32.mrf.mxu0
    %v784 = vadd.f32 %v757, %v783
    %v785 = vpop.f32.mrf.mxu0
    %v786 = vadd.f32 %v757, %v785
    %787 = vdwg.mxu0
    %v788 = vmax.f32 %v784, 0.0
    %v789 = vmax.f32 %v786, 0.0
    %v790 = vpack.c.bf16 %v789, %v788
    %v792 = vperm.slane %v92, 0
    %v810 = vunpack.c.l.b16 %v71
    %v811 = vunpack.c.l.b16 %v72
    %v812 = vunpack.c.l.b16 %v73
    %v813 = vunpack.c.l.b16 %v74
    %v814 = vunpack.c.l.b16 %v75
    %v815 = vunpack.c.l.b16 %v76
    %v816 = vunpack.c.l.b16 %v77
    %v817 = vunpack.c.l.b16 %v78
    %v818 = vunpack.c.l.b16 %v79
    %v819 = vunpack.c.l.b16 %v80
    %v820 = vunpack.c.l.b16 %v81
    %v821 = vunpack.c.l.b16 %v82
    %v822 = vunpack.c.l.b16 %v83
    %v823 = vunpack.c.l.b16 %v84
    %v824 = vunpack.c.l.b16 %v85
    %v825 = vunpack.c.l.b16 %v86
    %v826 = vpack.c.b16 %v811, %v810
    %v827 = vpack.c.b16 %v813, %v812
    %v828 = vpack.c.b16 %v815, %v814
    %v829 = vpack.c.b16 %v817, %v816
    %v830 = vpack.c.b16 %v819, %v818
    %v831 = vpack.c.b16 %v821, %v820
    %v832 = vpack.c.b16 %v823, %v822
    %v833 = vpack.c.b16 %v825, %v824
    %842 = vmatpush.bf16.msra.mxu0 %v833
    %843 = vmatpush.bf16.msra.mxu0 %v832
    %844 = vmatpush.bf16.msra.mxu0 %v831
    %845 = vmatpush.bf16.msra.mxu0 %v830
    %846 = vmatpush.bf16.msra.mxu0 %v829
    %847 = vmatpush.bf16.msra.mxu0 %v828
    %848 = vmatpush.bf16.msra.mxu0 %v827
    %849 = vmatpush.bf16.msra.mxu0 %v826
    %850 = vmatmul.bf16.gmra.mxu0 %v790
    %v851 = vpop.f32.mrf.mxu0
    %v852 = vadd.f32 %v792, %v851
    %v853 = vpop.f32.mrf.mxu0
    %v854 = vadd.f32 %v792, %v853
    %855 = vdwg.mxu0
    %v856 = vadd.f32 %v753, %v852
    %v857 = vadd.f32 %v754, %v854
    %v858 = vsel %vm111, %v856, 0.0
    %859 = vadd.xlane.f32.xlu0 %v858
    %v860 = vpop.xlane.xlu0 %859
    %v861 = vsel %vm111, %v857, 0.0
    %862 = vadd.xlane.f32.xlu0 %v861
    %v863 = vpop.xlane.xlu0 %862
    %v864 = vmul.f32 %v860, %v706
    %v865 = vmul.f32 %v863, %v706
    %v866 = vsub.f32 %v856, %v864
    %v867 = vsub.f32 %v857, %v865
    %v868 = vmul.f32 %v866, %v866
    %v869 = vmul.f32 %v867, %v867
    %v870 = vsel %vm111, %v868, 0.0
    %871 = vadd.xlane.f32.xlu0 %v870
    %v872 = vpop.xlane.xlu0 %871
    %v873 = vsel %vm111, %v869, 0.0
    %874 = vadd.xlane.f32.xlu0 %v873
    %v875 = vpop.xlane.xlu0 %874
    %v876 = vmul.f32 %v872, %v706
    %v877 = vmul.f32 %v875, %v706
    %v878 = vadd.f32 %v876, 1e-05
    %v879 = vadd.f32 %v877, 1e-05
    %v880 = vrsqrt.pop %v878
    %v881 = vmul.f32 %v880, %v878
    %v882 = vmul.f32 %v881, %v880
    %v883 = vmul.f32 0.5, %v882
    %v884 = vsub.f32 1.5, %v883
    %v885 = vmul.f32 %v880, %v884
    %vm886 = vweird.f32 %v878
    %vm887 = vweird.f32 %v880
    %vm888 = vmor %vm886, %vm887
    %v889 = vsel %vm888, %v880, %v885
    %v890 = vrsqrt.pop %v879
    %v891 = vmul.f32 %v890, %v879
    %v892 = vmul.f32 %v891, %v890
    %v893 = vmul.f32 0.5, %v892
    %v894 = vsub.f32 1.5, %v893
    %v895 = vmul.f32 %v890, %v894
    %vm896 = vweird.f32 %v879
    %vm897 = vweird.f32 %v890
    %vm898 = vmor %vm896, %vm897
    %v899 = vsel %vm898, %v890, %v895
    %v900 = vmul.f32 %v866, %v889
    %v901 = vmul.f32 %v867, %v899
    %v903 = vperm.slane %v93, 0
    %v905 = vmul.f32 %v900, %v903
    %v906 = vmul.f32 %v901, %v903
    %v908 = vperm.slane %v94, 0
    %v910 = vadd.f32 %v905, %v908
    %v911 = vadd.f32 %v906, %v908
    %s912 = scalar_lea.vmem %s2, 16
    %v913 = vld [vmem:[%s912] sm:$0xf]
    %v914 = vld [vmem:[%s912 + $0x4] sm:$0xf]
    %v915 = vld [vmem:[%s912 + $0x8] sm:$0xf]
    %v916 = vld [vmem:[%s912 + $0xc] sm:$0xf]
    %s917 = scalar_lea.vmem %s4, 16
    %v918 = vld [vmem:[%s917] sm:$0xf]
    %v919 = vld [vmem:[%s917 + $0x4] sm:$0xf]
    %v920 = vld [vmem:[%s917 + $0x8] sm:$0xf]
    %v921 = vld [vmem:[%s917 + $0xc] sm:$0xf]
    %s922 = scalar_lea.vmem %s8, 16
    %v923 = vld [vmem:[%s922] sm:$0xf]
    %v924 = vld [vmem:[%s922 + $0x4] sm:$0xf]
    %v925 = vld [vmem:[%s922 + $0x8] sm:$0xf]
    %v926 = vld [vmem:[%s922 + $0xc] sm:$0xf]
    %s927 = scalar_lea.vmem %s10, 64
    %v928 = vld [vmem:[%s927] sm:$0xf]
    %v929 = vld [vmem:[%s927 + $0x4] sm:$0xf]
    %v930 = vld [vmem:[%s927 + $0x8] sm:$0xf]
    %v931 = vld [vmem:[%s927 + $0xc] sm:$0xf]
    %v932 = vld [vmem:[%s927 + $0x10] sm:$0xf]
    %v933 = vld [vmem:[%s927 + $0x14] sm:$0xf]
    %v934 = vld [vmem:[%s927 + $0x18] sm:$0xf]
    %v935 = vld [vmem:[%s927 + $0x1c] sm:$0xf]
    %v936 = vld [vmem:[%s927 + $0x20] sm:$0xf]
    %v937 = vld [vmem:[%s927 + $0x24] sm:$0xf]
    %v938 = vld [vmem:[%s927 + $0x28] sm:$0xf]
    %v939 = vld [vmem:[%s927 + $0x2c] sm:$0xf]
    %v940 = vld [vmem:[%s927 + $0x30] sm:$0xf]
    %v941 = vld [vmem:[%s927 + $0x34] sm:$0xf]
    %v942 = vld [vmem:[%s927 + $0x38] sm:$0xf]
    %v943 = vld [vmem:[%s927 + $0x3c] sm:$0xf]
    %s944 = scalar_lea.vmem %s3, 1
    %v945 = vld [vmem:[%s944] sm:$0x1]
    %s946 = scalar_lea.vmem %s5, 1
    %v947 = vld [vmem:[%s946] sm:$0x1]
    %s948 = scalar_lea.vmem %s6, 1
    %v949 = vld [vmem:[%s948] sm:$0x1]
    %s950 = scalar_lea.vmem %s7, 1
    %v951 = vld [vmem:[%s950] sm:$0x1]
    %s952 = scalar_lea.vmem %s9, 1
    %v953 = vld [vmem:[%s952] sm:$0x1]
    %s954 = scalar_lea.vmem %s11, 1
    %v955 = vld [vmem:[%s954] sm:$0x1]
    %s956 = scalar_lea.vmem %s12, 1
    %v957 = vld [vmem:[%s956] sm:$0x1]
    %s958 = scalar_lea.vmem %s13, 1
    %v959 = vld [vmem:[%s958] sm:$0x1]
    %v960 = vpack.c.bf16 %v911, %v910
    %v962 = vperm.slane %v945, 0
    %v968 = vunpack.c.l.b16 %v913
    %v969 = vunpack.c.l.b16 %v914
    %v970 = vunpack.c.l.b16 %v915
    %v971 = vunpack.c.l.b16 %v916
    %v972 = vpack.c.b16 %v969, %v968
    %v973 = vpack.c.b16 %v971, %v970
    %v977 = vsel %vm111, %v960, 0
    %979 = vmatpush.bf16.msra.mxu0 0
    %980 = vmatpush.bf16.msra.mxu0 0
    %981 = vmatpush.bf16.msra.mxu0 0
    %982 = vmatpush.bf16.msra.mxu0 0
    %983 = vmatpush.bf16.msra.mxu0 0
    %984 = vmatpush.bf16.msra.mxu0 0
    %985 = vmatpush.bf16.msra.mxu0 %v973
    %986 = vmatpush.bf16.msra.mxu0 %v972
    %987 = vmatmul.bf16.gmra.mxu0 %v977
    %v988 = vpop.f32.mrf.mxu0
    %v989 = vadd.f32 %v962, %v988
    %v990 = vpop.f32.mrf.mxu0
    %v991 = vadd.f32 %v962, %v990
    %992 = vdwg.mxu0
    %v993 = vmul.f32 %v989, 0.35355338
    %v994 = vmul.f32 %v991, 0.35355338
    %v995 = vpack.c.bf16 %v993, %v993
    %v996 = vpack.c.bf16 %v994, %v994
    %v997 = vpack.c.bf16 %v989, %v989
    %v998 = vpack.c.bf16 %v991, %v991
    %v1000 = vunpack.c.l.b16 %v997
    %v1001 = vpack.c.b16 %v1000, %v1000
    %1002 = vrot.lane.b32.xlu0 %v1001, 96
    %v1003 = vpop.permute.xlu0 %1002
    %v1005 = vsel %vm146, %v995, 0
    %v1008 = vsel %vm146, %v1003, 0
    %1010 = vmatpush.bf16.xpose.msra.mxu0 0
    %1011 = vmatpush.bf16.xpose.msra.mxu0 0
    %1012 = vmatpush.bf16.xpose.msra.mxu0 0
    %1013 = vmatpush.bf16.xpose.msra.mxu0 0
    %1014 = vmatpush.bf16.xpose.msra.mxu0 0
    %1015 = vmatpush.bf16.xpose.msra.mxu0 0
    %1016 = vmatpush.bf16.xpose.msra.mxu0 0
    %1017 = vmatpush.bf16.xpose.msra.mxu0 %v1008
    %1018 = vmatmul.bf16.gmra.mxu0 %v1005
    %v1019 = vpop.f32.mrf.mxu0
    %v1020 = vadd.f32 %v137, %v1019
    %v1021 = vpop.f32.mrf.mxu0
    %1022 = vdwg.mxu0
    %v1024 = vunpack.c.l.b16 %v998
    %v1025 = vpack.c.b16 %v1024, %v1024
    %1026 = vrot.lane.b32.xlu0 %v1025, 96
    %v1027 = vpop.permute.xlu0 %1026
    %v1029 = vsel %vm146, %v996, 0
    %v1032 = vsel %vm146, %v1027, 0
    %1034 = vmatpush.bf16.xpose.msra.mxu0 0
    %1035 = vmatpush.bf16.xpose.msra.mxu0 0
    %1036 = vmatpush.bf16.xpose.msra.mxu0 0
    %1037 = vmatpush.bf16.xpose.msra.mxu0 0
    %1038 = vmatpush.bf16.xpose.msra.mxu0 0
    %1039 = vmatpush.bf16.xpose.msra.mxu0 0
    %1040 = vmatpush.bf16.xpose.msra.mxu0 0
    %1041 = vmatpush.bf16.xpose.msra.mxu0 %v1032
    %1042 = vmatmul.bf16.gmra.mxu0 %v1029
    %v1043 = vpop.f32.mrf.mxu0
    %v1044 = vadd.f32 %v138, %v1043
    %v1045 = vpop.f32.mrf.mxu0
    %1046 = vdwg.mxu0
    %v1047 = vsel %vm146, %v1020, -inf
    %1048 = vmax.xlane.f32.xlu0 %v1047
    %v1049 = vpop.xlane.xlu0 %1048
    %v1050 = vsel %vm146, %v1044, -inf
    %1051 = vmax.xlane.f32.xlu0 %v1050
    %v1052 = vpop.xlane.xlu0 %1051
    %v1053 = vsub.f32 %v1020, %v1049
    %v1054 = vsub.f32 %v1044, %v1052
    %v1055 = vmul.f32 %v1053, 1.442695
    %v1056 = vpow.pop %v1055
    %v1057 = vmul.f32 %v1054, 1.442695
    %v1058 = vpow.pop %v1057
    %v1059 = vsel %vm146, %v1056, 0.0
    %1060 = vadd.xlane.f32.xlu0 %v1059
    %v1061 = vpop.xlane.xlu0 %1060
    %v1062 = vsel %vm146, %v1058, 0.0
    %1063 = vadd.xlane.f32.xlu0 %v1062
    %v1064 = vpop.xlane.xlu0 %1063
    %v1065 = vrcp.pop %v1061
    %v1066 = vrcp.pop %v1064
    %v1067 = vmul.f32 %v1056, %v1065
    %v1068 = vmul.f32 %v1058, %v1066
    %v1069 = vpack.c.bf16 %v1067, %v1067
    %v1070 = vpack.c.bf16 %v1068, %v1068
    %1071 = vrot.lane.b32.xlu0 %v1001, 64
    %v1072 = vpop.permute.xlu0 %1071
    %v1074 = vsel %vm146, %v1069, 0
    %v1077 = vsel %vm219, %v1072, 0
    %1079 = vmatpush.bf16.msra.mxu0 0
    %1080 = vmatpush.bf16.msra.mxu0 0
    %1081 = vmatpush.bf16.msra.mxu0 0
    %1082 = vmatpush.bf16.msra.mxu0 0
    %1083 = vmatpush.bf16.msra.mxu0 0
    %1084 = vmatpush.bf16.msra.mxu0 0
    %1085 = vmatpush.bf16.msra.mxu0 0
    %1086 = vmatpush.bf16.msra.mxu0 %v1077
    %1087 = vmatmul.bf16.gmra.mxu0 %v1074
    %v1088 = vpop.f32.mrf.mxu0
    %v1089 = vadd.f32 0.0, %v1088
    %v1090 = vpop.f32.mrf.mxu0
    %1091 = vdwg.mxu0
    %1092 = vrot.lane.b32.xlu0 %v1025, 64
    %v1093 = vpop.permute.xlu0 %1092
    %v1095 = vsel %vm146, %v1070, 0
    %v1098 = vsel %vm219, %v1093, 0
    %1100 = vmatpush.bf16.msra.mxu0 0
    %1101 = vmatpush.bf16.msra.mxu0 0
    %1102 = vmatpush.bf16.msra.mxu0 0
    %1103 = vmatpush.bf16.msra.mxu0 0
    %1104 = vmatpush.bf16.msra.mxu0 0
    %1105 = vmatpush.bf16.msra.mxu0 0
    %1106 = vmatpush.bf16.msra.mxu0 0
    %1107 = vmatpush.bf16.msra.mxu0 %v1098
    %1108 = vmatmul.bf16.gmra.mxu0 %v1095
    %v1109 = vpop.f32.mrf.mxu0
    %v1110 = vadd.f32 0.0, %v1109
    %v1111 = vpop.f32.mrf.mxu0
    %1112 = vdwg.mxu0
    %v1113 = vpack.c.bf16 %v1110, %v1089
    %v1115 = vunpack.c.l.b16 %v995
    %v1116 = vpack.c.b16 %v1115, %v1115
    %1117 = vrot.lane.b32.xlu0 %v1116, 120
    %v1118 = vpop.permute.xlu0 %1117
    %1119 = vrot.lane.b32.xlu0 %v1001, 88
    %v1120 = vpop.permute.xlu0 %1119
    %v1122 = vsel %vm146, %v1118, 0
    %v1125 = vsel %vm146, %v1120, 0
    %1127 = vmatpush.bf16.xpose.msra.mxu0 0
    %1128 = vmatpush.bf16.xpose.msra.mxu0 0
    %1129 = vmatpush.bf16.xpose.msra.mxu0 0
    %1130 = vmatpush.bf16.xpose.msra.mxu0 0
    %1131 = vmatpush.bf16.xpose.msra.mxu0 0
    %1132 = vmatpush.bf16.xpose.msra.mxu0 0
    %1133 = vmatpush.bf16.xpose.msra.mxu0 0
    %1134 = vmatpush.bf16.xpose.msra.mxu0 %v1125
    %1135 = vmatmul.bf16.gmra.mxu0 %v1122
    %v1136 = vpop.f32.mrf.mxu0
    %v1137 = vadd.f32 %v137, %v1136
    %v1138 = vpop.f32.mrf.mxu0
    %1139 = vdwg.mxu0
    %v1141 = vunpack.c.l.b16 %v996
    %v1142 = vpack.c.b16 %v1141, %v1141
    %1143 = vrot.lane.b32.xlu0 %v1142, 120
    %v1144 = vpop.permute.xlu0 %1143
    %1145 = vrot.lane.b32.xlu0 %v1025, 88
    %v1146 = vpop.permute.xlu0 %1145
    %v1148 = vsel %vm146, %v1144, 0
    %v1151 = vsel %vm146, %v1146, 0
    %1153 = vmatpush.bf16.xpose.msra.mxu0 0
    %1154 = vmatpush.bf16.xpose.msra.mxu0 0
    %1155 = vmatpush.bf16.xpose.msra.mxu0 0
    %1156 = vmatpush.bf16.xpose.msra.mxu0 0
    %1157 = vmatpush.bf16.xpose.msra.mxu0 0
    %1158 = vmatpush.bf16.xpose.msra.mxu0 0
    %1159 = vmatpush.bf16.xpose.msra.mxu0 0
    %1160 = vmatpush.bf16.xpose.msra.mxu0 %v1151
    %1161 = vmatmul.bf16.gmra.mxu0 %v1148
    %v1162 = vpop.f32.mrf.mxu0
    %v1163 = vadd.f32 %v138, %v1162
    %v1164 = vpop.f32.mrf.mxu0
    %1165 = vdwg.mxu0
    %v1166 = vsel %vm146, %v1137, -inf
    %1167 = vmax.xlane.f32.xlu0 %v1166
    %v1168 = vpop.xlane.xlu0 %1167
    %v1169 = vsel %vm146, %v1163, -inf
    %1170 = vmax.xlane.f32.xlu0 %v1169
    %v1171 = vpop.xlane.xlu0 %1170
    %v1172 = vsub.f32 %v1137, %v1168
    %v1173 = vsub.f32 %v1163, %v1171
    %v1174 = vmul.f32 %v1172, 1.442695
    %v1175 = vpow.pop %v1174
    %v1176 = vmul.f32 %v1173, 1.442695
    %v1177 = vpow.pop %v1176
    %v1178 = vsel %vm146, %v1175, 0.0
    %1179 = vadd.xlane.f32.xlu0 %v1178
    %v1180 = vpop.xlane.xlu0 %1179
    %v1181 = vsel %vm146, %v1177, 0.0
    %1182 = vadd.xlane.f32.xlu0 %v1181
    %v1183 = vpop.xlane.xlu0 %1182
    %v1184 = vrcp.pop %v1180
    %v1185 = vrcp.pop %v1183
    %v1186 = vmul.f32 %v1175, %v1184
    %v1187 = vmul.f32 %v1177, %v1185
    %v1188 = vpack.c.bf16 %v1186, %v1186
    %v1189 = vpack.c.bf16 %v1187, %v1187
    %1190 = vrot.lane.b32.xlu0 %v1001, 56
    %v1191 = vpop.permute.xlu0 %1190
    %v1193 = vsel %vm146, %v1188, 0
    %v1196 = vsel %vm219, %v1191, 0
    %1198 = vmatpush.bf16.msra.mxu0 0
    %1199 = vmatpush.bf16.msra.mxu0 0
    %1200 = vmatpush.bf16.msra.mxu0 0
    %1201 = vmatpush.bf16.msra.mxu0 0
    %1202 = vmatpush.bf16.msra.mxu0 0
    %1203 = vmatpush.bf16.msra.mxu0 0
    %1204 = vmatpush.bf16.msra.mxu0 0
    %1205 = vmatpush.bf16.msra.mxu0 %v1196
    %1206 = vmatmul.bf16.gmra.mxu0 %v1193
    %v1207 = vpop.f32.mrf.mxu0
    %v1208 = vadd.f32 0.0, %v1207
    %v1209 = vpop.f32.mrf.mxu0
    %1210 = vdwg.mxu0
    %1211 = vrot.lane.b32.xlu0 %v1025, 56
    %v1212 = vpop.permute.xlu0 %1211
    %v1214 = vsel %vm146, %v1189, 0
    %v1217 = vsel %vm219, %v1212, 0
    %1219 = vmatpush.bf16.msra.mxu0 0
    %1220 = vmatpush.bf16.msra.mxu0 0
    %1221 = vmatpush.bf16.msra.mxu0 0
    %1222 = vmatpush.bf16.msra.mxu0 0
    %1223 = vmatpush.bf16.msra.mxu0 0
    %1224 = vmatpush.bf16.msra.mxu0 0
    %1225 = vmatpush.bf16.msra.mxu0 0
    %1226 = vmatpush.bf16.msra.mxu0 %v1217
    %1227 = vmatmul.bf16.gmra.mxu0 %v1214
    %v1228 = vpop.f32.mrf.mxu0
    %v1229 = vadd.f32 0.0, %v1228
    %v1230 = vpop.f32.mrf.mxu0
    %1231 = vdwg.mxu0
    %v1232 = vpack.c.bf16 %v1229, %v1208
    %v1234 = vsel %vm146, %v1232, 0
    %v1237 = vsel %vm219, %v919, 0
    %1239 = vmatpush.bf16.msra.mxu0 0
    %1240 = vmatpush.bf16.msra.mxu0 0
    %1241 = vmatpush.bf16.msra.mxu0 0
    %1242 = vmatpush.bf16.msra.mxu0 0
    %1243 = vmatpush.bf16.msra.mxu0 0
    %1244 = vmatpush.bf16.msra.mxu0 0
    %1245 = vmatpush.bf16.msra.mxu0 0
    %1246 = vmatpush.bf16.msra.mxu0 %v1237
    %1247 = vmatmul.bf16.gmra.mxu0 %v1234
    %v1248 = vpop.f32.mrf.mxu0
    %v1249 = vadd.f32 0.0, %v1248
    %v1250 = vpop.f32.mrf.mxu0
    %v1251 = vadd.f32 0.0, %v1250
    %1252 = vdwg.mxu0
    %v1254 = vsel %vm146, %v1113, 0
    %v1257 = vsel %vm219, %v918, 0
    %1259 = vmatpush.bf16.msra.mxu0 0
    %1260 = vmatpush.bf16.msra.mxu0 0
    %1261 = vmatpush.bf16.msra.mxu0 0
    %1262 = vmatpush.bf16.msra.mxu0 0
    %1263 = vmatpush.bf16.msra.mxu0 0
    %1264 = vmatpush.bf16.msra.mxu0 0
    %1265 = vmatpush.bf16.msra.mxu0 0
    %1266 = vmatpush.bf16.msra.mxu0 %v1257
    %1267 = vmatmul.bf16.gmra.mxu0 %v1254
    %v1268 = vpop.f32.mrf.mxu0
    %v1269 = vadd.f32 %v1249, %v1268
    %v1270 = vpop.f32.mrf.mxu0
    %v1271 = vadd.f32 %v1251, %v1270
    %1272 = vdwg.mxu0
    %1273 = vrot.lane.b32.xlu0 %v1116, 112
    %v1274 = vpop.permute.xlu0 %1273
    %1275 = vrot.lane.b32.xlu0 %v1001, 80
    %v1276 = vpop.permute.xlu0 %1275
    %v1278 = vsel %vm146, %v1274, 0
    %v1281 = vsel %vm146, %v1276, 0
    %1283 = vmatpush.bf16.xpose.msra.mxu0 0
    %1284 = vmatpush.bf16.xpose.msra.mxu0 0
    %1285 = vmatpush.bf16.xpose.msra.mxu0 0
    %1286 = vmatpush.bf16.xpose.msra.mxu0 0
    %1287 = vmatpush.bf16.xpose.msra.mxu0 0
    %1288 = vmatpush.bf16.xpose.msra.mxu0 0
    %1289 = vmatpush.bf16.xpose.msra.mxu0 0
    %1290 = vmatpush.bf16.xpose.msra.mxu0 %v1281
    %1291 = vmatmul.bf16.gmra.mxu0 %v1278
    %v1292 = vpop.f32.mrf.mxu0
    %v1293 = vadd.f32 %v137, %v1292
    %v1294 = vpop.f32.mrf.mxu0
    %1295 = vdwg.mxu0
    %1296 = vrot.lane.b32.xlu0 %v1142, 112
    %v1297 = vpop.permute.xlu0 %1296
    %1298 = vrot.lane.b32.xlu0 %v1025, 80
    %v1299 = vpop.permute.xlu0 %1298
    %v1301 = vsel %vm146, %v1297, 0
    %v1304 = vsel %vm146, %v1299, 0
    %1306 = vmatpush.bf16.xpose.msra.mxu0 0
    %1307 = vmatpush.bf16.xpose.msra.mxu0 0
    %1308 = vmatpush.bf16.xpose.msra.mxu0 0
    %1309 = vmatpush.bf16.xpose.msra.mxu0 0
    %1310 = vmatpush.bf16.xpose.msra.mxu0 0
    %1311 = vmatpush.bf16.xpose.msra.mxu0 0
    %1312 = vmatpush.bf16.xpose.msra.mxu0 0
    %1313 = vmatpush.bf16.xpose.msra.mxu0 %v1304
    %1314 = vmatmul.bf16.gmra.mxu0 %v1301
    %v1315 = vpop.f32.mrf.mxu0
    %v1316 = vadd.f32 %v138, %v1315
    %v1317 = vpop.f32.mrf.mxu0
    %1318 = vdwg.mxu0
    %v1319 = vsel %vm146, %v1293, -inf
    %1320 = vmax.xlane.f32.xlu0 %v1319
    %v1321 = vpop.xlane.xlu0 %1320
    %v1322 = vsel %vm146, %v1316, -inf
    %1323 = vmax.xlane.f32.xlu0 %v1322
    %v1324 = vpop.xlane.xlu0 %1323
    %v1325 = vsub.f32 %v1293, %v1321
    %v1326 = vsub.f32 %v1316, %v1324
    %v1327 = vmul.f32 %v1325, 1.442695
    %v1328 = vpow.pop %v1327
    %v1329 = vmul.f32 %v1326, 1.442695
    %v1330 = vpow.pop %v1329
    %v1331 = vsel %vm146, %v1328, 0.0
    %1332 = vadd.xlane.f32.xlu0 %v1331
    %v1333 = vpop.xlane.xlu0 %1332
    %v1334 = vsel %vm146, %v1330, 0.0
    %1335 = vadd.xlane.f32.xlu0 %v1334
    %v1336 = vpop.xlane.xlu0 %1335
    %v1337 = vrcp.pop %v1333
    %v1338 = vrcp.pop %v1336
    %v1339 = vmul.f32 %v1328, %v1337
    %v1340 = vmul.f32 %v1330, %v1338
    %v1341 = vpack.c.bf16 %v1339, %v1339
    %v1342 = vpack.c.bf16 %v1340, %v1340
    %1343 = vrot.lane.b32.xlu0 %v1001, 48
    %v1344 = vpop.permute.xlu0 %1343
    %v1346 = vsel %vm146, %v1341, 0
    %v1349 = vsel %vm219, %v1344, 0
    %1351 = vmatpush.bf16.msra.mxu0 0
    %1352 = vmatpush.bf16.msra.mxu0 0
    %1353 = vmatpush.bf16.msra.mxu0 0
    %1354 = vmatpush.bf16.msra.mxu0 0
    %1355 = vmatpush.bf16.msra.mxu0 0
    %1356 = vmatpush.bf16.msra.mxu0 0
    %1357 = vmatpush.bf16.msra.mxu0 0
    %1358 = vmatpush.bf16.msra.mxu0 %v1349
    %1359 = vmatmul.bf16.gmra.mxu0 %v1346
    %v1360 = vpop.f32.mrf.mxu0
    %v1361 = vadd.f32 0.0, %v1360
    %v1362 = vpop.f32.mrf.mxu0
    %1363 = vdwg.mxu0
    %1364 = vrot.lane.b32.xlu0 %v1025, 48
    %v1365 = vpop.permute.xlu0 %1364
    %v1367 = vsel %vm146, %v1342, 0
    %v1370 = vsel %vm219, %v1365, 0
    %1372 = vmatpush.bf16.msra.mxu0 0
    %1373 = vmatpush.bf16.msra.mxu0 0
    %1374 = vmatpush.bf16.msra.mxu0 0
    %1375 = vmatpush.bf16.msra.mxu0 0
    %1376 = vmatpush.bf16.msra.mxu0 0
    %1377 = vmatpush.bf16.msra.mxu0 0
    %1378 = vmatpush.bf16.msra.mxu0 0
    %1379 = vmatpush.bf16.msra.mxu0 %v1370
    %1380 = vmatmul.bf16.gmra.mxu0 %v1367
    %v1381 = vpop.f32.mrf.mxu0
    %v1382 = vadd.f32 0.0, %v1381
    %v1383 = vpop.f32.mrf.mxu0
    %1384 = vdwg.mxu0
    %v1385 = vpack.c.bf16 %v1382, %v1361
    %v1387 = vsel %vm146, %v1385, 0
    %v1390 = vsel %vm219, %v920, 0
    %1392 = vmatpush.bf16.msra.mxu0 0
    %1393 = vmatpush.bf16.msra.mxu0 0
    %1394 = vmatpush.bf16.msra.mxu0 0
    %1395 = vmatpush.bf16.msra.mxu0 0
    %1396 = vmatpush.bf16.msra.mxu0 0
    %1397 = vmatpush.bf16.msra.mxu0 0
    %1398 = vmatpush.bf16.msra.mxu0 0
    %1399 = vmatpush.bf16.msra.mxu0 %v1390
    %1400 = vmatmul.bf16.gmra.mxu0 %v1387
    %v1401 = vpop.f32.mrf.mxu0
    %v1402 = vadd.f32 0.0, %v1401
    %v1403 = vpop.f32.mrf.mxu0
    %v1404 = vadd.f32 0.0, %v1403
    %1405 = vdwg.mxu0
    %v1406 = vadd.f32 %v1269, %v1402
    %v1407 = vadd.f32 %v1271, %v1404
    %1408 = vrot.lane.b32.xlu0 %v1116, 104
    %v1409 = vpop.permute.xlu0 %1408
    %1410 = vrot.lane.b32.xlu0 %v1001, 72
    %v1411 = vpop.permute.xlu0 %1410
    %v1413 = vsel %vm146, %v1409, 0
    %v1416 = vsel %vm146, %v1411, 0
    %1418 = vmatpush.bf16.xpose.msra.mxu0 0
    %1419 = vmatpush.bf16.xpose.msra.mxu0 0
    %1420 = vmatpush.bf16.xpose.msra.mxu0 0
    %1421 = vmatpush.bf16.xpose.msra.mxu0 0
    %1422 = vmatpush.bf16.xpose.msra.mxu0 0
    %1423 = vmatpush.bf16.xpose.msra.mxu0 0
    %1424 = vmatpush.bf16.xpose.msra.mxu0 0
    %1425 = vmatpush.bf16.xpose.msra.mxu0 %v1416
    %1426 = vmatmul.bf16.gmra.mxu0 %v1413
    %v1427 = vpop.f32.mrf.mxu0
    %v1428 = vadd.f32 %v137, %v1427
    %v1429 = vpop.f32.mrf.mxu0
    %1430 = vdwg.mxu0
    %1431 = vrot.lane.b32.xlu0 %v1142, 104
    %v1432 = vpop.permute.xlu0 %1431
    %1433 = vrot.lane.b32.xlu0 %v1025, 72
    %v1434 = vpop.permute.xlu0 %1433
    %v1436 = vsel %vm146, %v1432, 0
    %v1439 = vsel %vm146, %v1434, 0
    %1441 = vmatpush.bf16.xpose.msra.mxu0 0
    %1442 = vmatpush.bf16.xpose.msra.mxu0 0
    %1443 = vmatpush.bf16.xpose.msra.mxu0 0
    %1444 = vmatpush.bf16.xpose.msra.mxu0 0
    %1445 = vmatpush.bf16.xpose.msra.mxu0 0
    %1446 = vmatpush.bf16.xpose.msra.mxu0 0
    %1447 = vmatpush.bf16.xpose.msra.mxu0 0
    %1448 = vmatpush.bf16.xpose.msra.mxu0 %v1439
    %1449 = vmatmul.bf16.gmra.mxu0 %v1436
    %v1450 = vpop.f32.mrf.mxu0
    %v1451 = vadd.f32 %v138, %v1450
    %v1452 = vpop.f32.mrf.mxu0
    %1453 = vdwg.mxu0
    %v1454 = vsel %vm146, %v1428, -inf
    %1455 = vmax.xlane.f32.xlu0 %v1454
    %v1456 = vpop.xlane.xlu0 %1455
    %v1457 = vsel %vm146, %v1451, -inf
    %1458 = vmax.xlane.f32.xlu0 %v1457
    %v1459 = vpop.xlane.xlu0 %1458
    %v1460 = vsub.f32 %v1428, %v1456
    %v1461 = vsub.f32 %v1451, %v1459
    %v1462 = vmul.f32 %v1460, 1.442695
    %v1463 = vpow.pop %v1462
    %v1464 = vmul.f32 %v1461, 1.442695
    %v1465 = vpow.pop %v1464
    %v1466 = vsel %vm146, %v1463, 0.0
    %1467 = vadd.xlane.f32.xlu0 %v1466
    %v1468 = vpop.xlane.xlu0 %1467
    %v1469 = vsel %vm146, %v1465, 0.0
    %1470 = vadd.xlane.f32.xlu0 %v1469
    %v1471 = vpop.xlane.xlu0 %1470
    %v1472 = vrcp.pop %v1468
    %v1473 = vrcp.pop %v1471
    %v1474 = vmul.f32 %v1463, %v1472
    %v1475 = vmul.f32 %v1465, %v1473
    %v1476 = vpack.c.bf16 %v1474, %v1474
    %v1477 = vpack.c.bf16 %v1475, %v1475
    %1478 = vrot.lane.b32.xlu0 %v1001, 40
    %v1479 = vpop.permute.xlu0 %1478
    %v1481 = vsel %vm146, %v1476, 0
    %v1484 = vsel %vm219, %v1479, 0
    %1486 = vmatpush.bf16.msra.mxu0 0
    %1487 = vmatpush.bf16.msra.mxu0 0
    %1488 = vmatpush.bf16.msra.mxu0 0
    %1489 = vmatpush.bf16.msra.mxu0 0
    %1490 = vmatpush.bf16.msra.mxu0 0
    %1491 = vmatpush.bf16.msra.mxu0 0
    %1492 = vmatpush.bf16.msra.mxu0 0
    %1493 = vmatpush.bf16.msra.mxu0 %v1484
    %1494 = vmatmul.bf16.gmra.mxu0 %v1481
    %v1495 = vpop.f32.mrf.mxu0
    %v1496 = vadd.f32 0.0, %v1495
    %v1497 = vpop.f32.mrf.mxu0
    %1498 = vdwg.mxu0
    %1499 = vrot.lane.b32.xlu0 %v1025, 40
    %v1500 = vpop.permute.xlu0 %1499
    %v1502 = vsel %vm146, %v1477, 0
    %v1505 = vsel %vm219, %v1500, 0
    %1507 = vmatpush.bf16.msra.mxu0 0
    %1508 = vmatpush.bf16.msra.mxu0 0
    %1509 = vmatpush.bf16.msra.mxu0 0
    %1510 = vmatpush.bf16.msra.mxu0 0
    %1511 = vmatpush.bf16.msra.mxu0 0
    %1512 = vmatpush.bf16.msra.mxu0 0
    %1513 = vmatpush.bf16.msra.mxu0 0
    %1514 = vmatpush.bf16.msra.mxu0 %v1505
    %1515 = vmatmul.bf16.gmra.mxu0 %v1502
    %v1516 = vpop.f32.mrf.mxu0
    %v1517 = vadd.f32 0.0, %v1516
    %v1518 = vpop.f32.mrf.mxu0
    %1519 = vdwg.mxu0
    %v1520 = vpack.c.bf16 %v1517, %v1496
    %v1522 = vsel %vm146, %v1520, 0
    %v1525 = vsel %vm219, %v921, 0
    %1527 = vmatpush.bf16.msra.mxu0 0
    %1528 = vmatpush.bf16.msra.mxu0 0
    %1529 = vmatpush.bf16.msra.mxu0 0
    %1530 = vmatpush.bf16.msra.mxu0 0
    %1531 = vmatpush.bf16.msra.mxu0 0
    %1532 = vmatpush.bf16.msra.mxu0 0
    %1533 = vmatpush.bf16.msra.mxu0 0
    %1534 = vmatpush.bf16.msra.mxu0 %v1525
    %1535 = vmatmul.bf16.gmra.mxu0 %v1522
    %v1536 = vpop.f32.mrf.mxu0
    %v1537 = vadd.f32 0.0, %v1536
    %v1538 = vpop.f32.mrf.mxu0
    %v1539 = vadd.f32 0.0, %v1538
    %1540 = vdwg.mxu0
    %v1541 = vadd.f32 %v1406, %v1537
    %v1542 = vadd.f32 %v1407, %v1539
    %v1544 = vperm.slane %v947, 0
    %v1546 = vadd.f32 %v1541, %v1544
    %v1547 = vadd.f32 %v1542, %v1544
    %v1548 = vadd.f32 %v910, %v1546
    %v1549 = vadd.f32 %v911, %v1547
    %v1550 = vsel %vm111, %v1548, 0.0
    %1551 = vadd.xlane.f32.xlu0 %v1550
    %v1552 = vpop.xlane.xlu0 %1551
    %v1553 = vsel %vm111, %v1549, 0.0
    %1554 = vadd.xlane.f32.xlu0 %v1553
    %v1555 = vpop.xlane.xlu0 %1554
    %v1556 = vmul.f32 %v1552, %v706
    %v1557 = vmul.f32 %v1555, %v706
    %v1558 = vsub.f32 %v1548, %v1556
    %v1559 = vsub.f32 %v1549, %v1557
    %v1560 = vmul.f32 %v1558, %v1558
    %v1561 = vmul.f32 %v1559, %v1559
    %v1562 = vsel %vm111, %v1560, 0.0
    %1563 = vadd.xlane.f32.xlu0 %v1562
    %v1564 = vpop.xlane.xlu0 %1563
    %v1565 = vsel %vm111, %v1561, 0.0
    %1566 = vadd.xlane.f32.xlu0 %v1565
    %v1567 = vpop.xlane.xlu0 %1566
    %v1568 = vmul.f32 %v1564, %v706
    %v1569 = vmul.f32 %v1567, %v706
    %v1570 = vadd.f32 %v1568, 1e-05
    %v1571 = vadd.f32 %v1569, 1e-05
    %v1572 = vrsqrt.pop %v1570
    %v1573 = vmul.f32 %v1572, %v1570
    %v1574 = vmul.f32 %v1573, %v1572
    %v1575 = vmul.f32 0.5, %v1574
    %v1576 = vsub.f32 1.5, %v1575
    %v1577 = vmul.f32 %v1572, %v1576
    %vm1578 = vweird.f32 %v1570
    %vm1579 = vweird.f32 %v1572
    %vm1580 = vmor %vm1578, %vm1579
    %v1581 = vsel %vm1580, %v1572, %v1577
    %v1582 = vrsqrt.pop %v1571
    %v1583 = vmul.f32 %v1582, %v1571
    %v1584 = vmul.f32 %v1583, %v1582
    %v1585 = vmul.f32 0.5, %v1584
    %v1586 = vsub.f32 1.5, %v1585
    %v1587 = vmul.f32 %v1582, %v1586
    %vm1588 = vweird.f32 %v1571
    %vm1589 = vweird.f32 %v1582
    %vm1590 = vmor %vm1588, %vm1589
    %v1591 = vsel %vm1590, %v1582, %v1587
    %v1592 = vmul.f32 %v1558, %v1581
    %v1593 = vmul.f32 %v1559, %v1591
    %v1595 = vperm.slane %v949, 0
    %v1597 = vmul.f32 %v1592, %v1595
    %v1598 = vmul.f32 %v1593, %v1595
    %v1600 = vperm.slane %v951, 0
    %v1602 = vadd.f32 %v1597, %v1600
    %v1603 = vadd.f32 %v1598, %v1600
    %v1604 = vpack.c.bf16 %v1603, %v1602
    %v1606 = vperm.slane %v953, 0
    %v1612 = vunpack.c.l.b16 %v923
    %v1613 = vunpack.c.l.b16 %v924
    %v1614 = vunpack.c.l.b16 %v925
    %v1615 = vunpack.c.l.b16 %v926
    %v1616 = vpack.c.b16 %v1613, %v1612
    %v1617 = vpack.c.b16 %v1615, %v1614
    %v1621 = vsel %vm111, %v1604, 0
    %1623 = vmatpush.bf16.msra.mxu0 0
    %1624 = vmatpush.bf16.msra.mxu0 0
    %1625 = vmatpush.bf16.msra.mxu0 0
    %1626 = vmatpush.bf16.msra.mxu0 0
    %1627 = vmatpush.bf16.msra.mxu0 0
    %1628 = vmatpush.bf16.msra.mxu0 0
    %1629 = vmatpush.bf16.msra.mxu0 %v1617
    %1630 = vmatpush.bf16.msra.mxu0 %v1616
    %1631 = vmatmul.bf16.gmra.mxu0 %v1621
    %v1632 = vpop.f32.mrf.mxu0
    %v1633 = vadd.f32 %v1606, %v1632
    %v1634 = vpop.f32.mrf.mxu0
    %v1635 = vadd.f32 %v1606, %v1634
    %1636 = vdwg.mxu0
    %v1637 = vmax.f32 %v1633, 0.0
    %v1638 = vmax.f32 %v1635, 0.0
    %v1639 = vpack.c.bf16 %v1638, %v1637
    %v1641 = vperm.slane %v955, 0
    %v1659 = vunpack.c.l.b16 %v928
    %v1660 = vunpack.c.l.b16 %v929
    %v1661 = vunpack.c.l.b16 %v930
    %v1662 = vunpack.c.l.b16 %v931
    %v1663 = vunpack.c.l.b16 %v932
    %v1664 = vunpack.c.l.b16 %v933
    %v1665 = vunpack.c.l.b16 %v934
    %v1666 = vunpack.c.l.b16 %v935
    %v1667 = vunpack.c.l.b16 %v936
    %v1668 = vunpack.c.l.b16 %v937
    %v1669 = vunpack.c.l.b16 %v938
    %v1670 = vunpack.c.l.b16 %v939
    %v1671 = vunpack.c.l.b16 %v940
    %v1672 = vunpack.c.l.b16 %v941
    %v1673 = vunpack.c.l.b16 %v942
    %v1674 = vunpack.c.l.b16 %v943
    %v1675 = vpack.c.b16 %v1660, %v1659
    %v1676 = vpack.c.b16 %v1662, %v1661
    %v1677 = vpack.c.b16 %v1664, %v1663
    %v1678 = vpack.c.b16 %v1666, %v1665
    %v1679 = vpack.c.b16 %v1668, %v1667
    %v1680 = vpack.c.b16 %v1670, %v1669
    %v1681 = vpack.c.b16 %v1672, %v1671
    %v1682 = vpack.c.b16 %v1674, %v1673
    %1691 = vmatpush.bf16.msra.mxu0 %v1682
    %1692 = vmatpush.bf16.msra.mxu0 %v1681
    %1693 = vmatpush.bf16.msra.mxu0 %v1680
    %1694 = vmatpush.bf16.msra.mxu0 %v1679
    %1695 = vmatpush.bf16.msra.mxu0 %v1678
    %1696 = vmatpush.bf16.msra.mxu0 %v1677
    %1697 = vmatpush.bf16.msra.mxu0 %v1676
    %1698 = vmatpush.bf16.msra.mxu0 %v1675
    %1699 = vmatmul.bf16.gmra.mxu0 %v1639
    %v1700 = vpop.f32.mrf.mxu0
    %v1701 = vadd.f32 %v1641, %v1700
    %v1702 = vpop.f32.mrf.mxu0
    %v1703 = vadd.f32 %v1641, %v1702
    %1704 = vdwg.mxu0
    %v1705 = vadd.f32 %v1602, %v1701
    %v1706 = vadd.f32 %v1603, %v1703
    %v1707 = vsel %vm111, %v1705, 0.0
    %1708 = vadd.xlane.f32.xlu0 %v1707
    %v1709 = vpop.xlane.xlu0 %1708
    %v1710 = vsel %vm111, %v1706, 0.0
    %1711 = vadd.xlane.f32.xlu0 %v1710
    %v1712 = vpop.xlane.xlu0 %1711
    %v1713 = vmul.f32 %v1709, %v706
    %v1714 = vmul.f32 %v1712, %v706
    %v1715 = vsub.f32 %v1705, %v1713
    %v1716 = vsub.f32 %v1706, %v1714
    %v1717 = vmul.f32 %v1715, %v1715
    %v1718 = vmul.f32 %v1716, %v1716
    %v1719 = vsel %vm111, %v1717, 0.0
    %1720 = vadd.xlane.f32.xlu0 %v1719
    %v1721 = vpop.xlane.xlu0 %1720
    %v1722 = vsel %vm111, %v1718, 0.0
    %1723 = vadd.xlane.f32.xlu0 %v1722
    %v1724 = vpop.xlane.xlu0 %1723
    %v1725 = vmul.f32 %v1721, %v706
    %v1726 = vmul.f32 %v1724, %v706
    %v1727 = vadd.f32 %v1725, 1e-05
    %v1728 = vadd.f32 %v1726, 1e-05
    %v1729 = vrsqrt.pop %v1727
    %v1730 = vmul.f32 %v1729, %v1727
    %v1731 = vmul.f32 %v1730, %v1729
    %v1732 = vmul.f32 0.5, %v1731
    %v1733 = vsub.f32 1.5, %v1732
    %v1734 = vmul.f32 %v1729, %v1733
    %vm1735 = vweird.f32 %v1727
    %vm1736 = vweird.f32 %v1729
    %vm1737 = vmor %vm1735, %vm1736
    %v1738 = vsel %vm1737, %v1729, %v1734
    %v1739 = vrsqrt.pop %v1728
    %v1740 = vmul.f32 %v1739, %v1728
    %v1741 = vmul.f32 %v1740, %v1739
    %v1742 = vmul.f32 0.5, %v1741
    %v1743 = vsub.f32 1.5, %v1742
    %v1744 = vmul.f32 %v1739, %v1743
    %vm1745 = vweird.f32 %v1728
    %vm1746 = vweird.f32 %v1739
    %vm1747 = vmor %vm1745, %vm1746
    %v1748 = vsel %vm1747, %v1739, %v1744
    %v1749 = vmul.f32 %v1715, %v1738
    %v1750 = vmul.f32 %v1716, %v1748
    %v1752 = vperm.slane %v957, 0
    %v1754 = vmul.f32 %v1749, %v1752
    %v1755 = vmul.f32 %v1750, %v1752
    %v1757 = vperm.slane %v959, 0
    %v1759 = vadd.f32 %v1754, %v1757
    %v1760 = vadd.f32 %v1755, %v1757
    %v1761 = vpack.c.bf16 %v1759, %v1759
    %v1762 = vpack.c.bf16 %v1760, %v1760
    %v1763 = vld [vmem:[%s14] sm:$0xf]
    %v1764 = vld [vmem:[%s14 + $0x4] sm:$0xf]
    %v1765 = vld [vmem:[%s14 + $0x8] sm:$0xf]
    %v1766 = vld [vmem:[%s14 + $0xc] sm:$0xf]
    %v1767 = vld [vmem:[%s15] sm:$0x1]
    %v1769 = vperm.slane %v1767, 0
    %v1773 = vunpack.c.l.b16 %v1761
    %v1774 = vunpack.c.l.b16 %v1762
    %v1775 = vrot.slane %v1774, 7
    %vm1776 = vcmask 1041409
    %v1777 = vsel %vm1776, %v1775, %v1773
    %v1778 = vpack.c.b16 %v1777, %v1777
    %v1783 = vunpack.c.l.b16 %v1763
    %v1784 = vunpack.c.l.b16 %v1764
    %v1785 = vunpack.c.l.b16 %v1765
    %v1786 = vunpack.c.l.b16 %v1766
    %v1787 = vpack.c.b16 %v1784, %v1783
    %v1788 = vpack.c.b16 %v1786, %v1785
    %v1792 = vsel %vm111, %v1778, 0
    %1794 = vmatpush.bf16.msra.mxu0 0
    %1795 = vmatpush.bf16.msra.mxu0 0
    %1796 = vmatpush.bf16.msra.mxu0 0
    %1797 = vmatpush.bf16.msra.mxu0 0
    %1798 = vmatpush.bf16.msra.mxu0 0
    %1799 = vmatpush.bf16.msra.mxu0 0
    %1800 = vmatpush.bf16.msra.mxu0 %v1788
    %1801 = vmatpush.bf16.msra.mxu0 %v1787
    %1802 = vmatmul.bf16.gmra.mxu0 %v1792
    %v1803 = vpop.f32.mrf.mxu0
    %v1804 = vadd.f32 %v1769, %v1803
    %v1805 = vpop.f32.mrf.mxu0
    %1806 = vdwg.mxu0
    %1807 = vst [vmem:[#allocation2] sm:$0x3] %v1804
    // Predicated region
    $region66: #{tpu_custom_call.1} parent=1 // pred_check
      _
    $region67: #{tpu_custom_call.1} parent=1 // pred_check_branch
      %1809 = sbr.rel (0) target = $region69
    $region68: #{tpu_custom_call.1} parent=1 // pred_region
      %1811 = vsyncadd [#allocation3], 0
      %s1813 = sshll.u32 [#allocation2], 4
      %s1814 = int_to_ptr.vmem [resolvable:$true] %s1813
      %s1815 = sshll.u32 %s16, 4
      %s1816 = int_to_ptr.hbm [resolvable:$true] %s1815
      %1818 = dma.vmem_to_hbm [thread:$0]  %s1814, 32, %s1816, [#allocation3]
    $region69: #{tpu_custom_call.1} parent=1 // pred_fallthru
      _
    // Predicated region
    $region70: #{tpu_custom_call.1} parent=1 // pred_check
      _
    $region71: #{tpu_custom_call.1} parent=1 // pred_check_branch
      %1820 = sbr.rel (0) target = $region73
    $region72: #{tpu_custom_call.1} parent=1 // pred_region
      %1822 = dma.done [#allocation3], 32
    $region73: #{tpu_custom_call.1} parent=1 // pred_fallthru
      _
    %1823 = vsyncpa [#allocation3], 1

</llo_original>
